<compile_context>
chip_gen: v7x
topology: tpu7x:2x2x1
jax: 0.10.0
libtpu: 0.0.40
codegen_flags: <defaults>
</compile_context>

<pallas_src>
import jax
import jax.numpy as jnp
from jax.experimental import pallas as pl
from jax.experimental.pallas import tpu as pltpu


def _round_up(x, m):
    return ((x + m - 1) // m) * m


def _vmem_limit_bytes():
    # Generation-dependent VMEM budget: ~3/4 of physical, capped at 100 MiB.
    # (v5e/v6e: 128 MiB physical -> ~96 MiB; v7x: 64 MiB -> 48 MiB.)
    try:
        cap = int(pltpu.get_tpu_info().vmem_capacity_bytes)
    except Exception:
        cap = 64 * 1024 * 1024
    return int(min(cap * 3 // 4, 100 * 1024 * 1024))


# --------------------------------------------------------------------------- #
# Fused kernel: atom encoder stand-in (once, into VMEM scratch) + mean readout
# (in-kernel membership mask) + both FFN heads + sigmoid-average.
# Grid iterates over molecule tiles.
# --------------------------------------------------------------------------- #
def _grover_fused_kernel(starts_ref, sizes_ref, invc_ref, f_atoms_ref,
                         w_e_ref, b_e_ref, feats_ref,
                         w1a_ref, b1a_ref, w1b_ref, b1b_ref,
                         w2a_ref, b2a_ref, w2b_ref, b2b_ref,
                         out_ref, atom_emb_ref):
    two_h = atom_emb_ref.shape[1]
    h_p = two_h // 2
    n_atoms_p = atom_emb_ref.shape[0]
    mt = out_ref.shape[0]

    # Atom "encoder" stand-in: both branches share the LHS so the weights are
    # fused along N; computed once into persistent VMEM scratch (no HBM round
    # trip, no second kernel launch).
    @pl.when(pl.program_id(0) == 0)
    def _():
        emb = jnp.dot(f_atoms_ref[...], w_e_ref[...],
                      preferred_element_type=jnp.float32) + b_e_ref[...]
        atom_emb_ref[...] = emb.astype(atom_emb_ref.dtype)

    # Readout(rtype='mean'): binary membership mask built in-kernel from the
    # scope starts/sizes (exact in bf16), one MXU matmul, f32 1/count scale.
    # NOTE: padded atoms carry atom_emb == b_e but are never selected by the
    # mask; keep this masking if the readout is ever changed to a plain sum.
    atom_ids = jax.lax.broadcasted_iota(jnp.int32, (mt, n_atoms_p), 1)
    starts = starts_ref[...]
    ends = starts + sizes_ref[...]
    in_scope = (atom_ids >= starts) & (atom_ids < ends)
    mask = jnp.where(in_scope, 1.0, 0.0).astype(jnp.bfloat16)

    mol_sum = jnp.dot(mask, atom_emb_ref[...],
                      preferred_element_type=jnp.float32)
    mol = (mol_sum * invc_ref[...]).astype(jnp.bfloat16)        # [mt, 2*h_p]

    feats = feats_ref[...]
    # FFN layer 1, concat-K per head: [mol_x | feats] @ vstack(w1x_h, w1x_f).
    lhs_a = jnp.concatenate([mol[:, :h_p], feats], axis=1)
    lhs_b = jnp.concatenate([mol[:, h_p:], feats], axis=1)

    z1a = jnp.dot(lhs_a, w1a_ref[...],
                  preferred_element_type=jnp.float32) + b1a_ref[...]
    z1b = jnp.dot(lhs_b, w1b_ref[...],
                  preferred_element_type=jnp.float32) + b1b_ref[...]

    h_a = jnp.maximum(z1a, 0.0).astype(jnp.bfloat16)
    h_b = jnp.maximum(z1b, 0.0).astype(jnp.bfloat16)

    logits_a = jnp.dot(h_a, w2a_ref[...],
                       preferred_element_type=jnp.float32) + b2a_ref[...]
    logits_b = jnp.dot(h_b, w2b_ref[...],
                       preferred_element_type=jnp.float32) + b2b_ref[...]

    # sigmoid(x) == 0.5*(tanh(x/2)+1): EUP path, stable, bounded in [0,1].
    p_a = 0.5 * (jnp.tanh(0.5 * logits_a) + 1.0)
    p_b = 0.5 * (jnp.tanh(0.5 * logits_b) + 1.0)
    out_ref[...] = 0.5 * (p_a + p_b)


# --------------------------------------------------------------------------- #
# One-time parameter fusion / padding / bf16 cast (constants at eval time).
# --------------------------------------------------------------------------- #
def prepare_grover_params(params, *, out_pad=128):
    node_fdim, hidden = params["w_ea"].shape
    features_dim, ffn_hidden = params["w1a_f"].shape
    output_size = params["w2a"].shape[1]

    node_fdim_p = _round_up(node_fdim, 128)
    feat_dim_p = _round_up(features_dim, 128)
    hidden_p = _round_up(hidden, 128)
    ffn_hidden_p = _round_up(ffn_hidden, 128)

    def padw(w, rows, cols):
        return jnp.pad(w, ((0, rows - w.shape[0]), (0, cols - w.shape[1])))

    # Encoder stand-in weights, fused along N: [w_ea | w_eb].
    w_e = jnp.concatenate([padw(params["w_ea"], node_fdim_p, hidden_p),
                           padw(params["w_eb"], node_fdim_p, hidden_p)],
                          axis=1).astype(jnp.bfloat16)
    b_e = jnp.concatenate([padw(params["b_ea"], 1, hidden_p),
                           padw(params["b_eb"], 1, hidden_p)], axis=1)

    # FFN layer 1, concat-K per head: vstack(w1x_h, w1x_f).
    def w1_full(wh, wf):
        return jnp.concatenate([padw(wh, hidden_p, ffn_hidden_p),
                                padw(wf, feat_dim_p, ffn_hidden_p)],
                               axis=0).astype(jnp.bfloat16)

    prepared = {
        "w_e": w_e, "b_e": b_e,
        "w1a": w1_full(params["w1a_h"], params["w1a_f"]),
        "b1a": padw(params["b1a"], 1, ffn_hidden_p),
        "w1b": w1_full(params["w1b_h"], params["w1b_f"]),
        "b1b": padw(params["b1b"], 1, ffn_hidden_p),
        # FFN layer 2: lane-dense (output_size padded to out_pad columns).
        "w2a": padw(params["w2a"], ffn_hidden_p, out_pad).astype(jnp.bfloat16),
        "b2a": padw(params["b2a"], 1, out_pad),
        "w2b": padw(params["w2b"], ffn_hidden_p, out_pad).astype(jnp.bfloat16),
        "b2b": padw(params["b2b"], 1, out_pad),
    }
    dims = {
        "node_fdim": node_fdim, "node_fdim_p": node_fdim_p,
        "features_dim": features_dim, "feat_dim_p": feat_dim_p,
        "hidden_p": hidden_p, "ffn_hidden_p": ffn_hidden_p,
        "output_size": output_size, "out_pad": out_pad,
    }
    return prepared, dims


# --------------------------------------------------------------------------- #
# Per-call wrapper: activation padding + single pallas_call.
# --------------------------------------------------------------------------- #
def grover_finetune_forward(f_atoms, a_scope_starts, a_scope_sizes, features,
                            prepared, dims, *, mol_tile=128):
    n_atoms, node_fdim = f_atoms.shape
    n_mols, features_dim = features.shape
    assert node_fdim == dims["node_fdim"]
    assert features_dim == dims["features_dim"]

    node_fdim_p = dims["node_fdim_p"]
    feat_dim_p = dims["feat_dim_p"]
    hidden_p = dims["hidden_p"]
    ffn_hidden_p = dims["ffn_hidden_p"]
    out_pad = dims["out_pad"]
    output_size = dims["output_size"]
    two_hp = 2 * hidden_p

    # Atoms padded to a multiple of 128 so the readout-matmul K is lane-aligned.
    n_atoms_p = _round_up(n_atoms, 128)
    # Fat molecule tiles, clamped to the (8-aligned) batch to avoid overpadding.
    mol_tile = min(mol_tile, _round_up(n_mols, 8))
    n_mols_p = _round_up(n_mols, mol_tile)

    f_atoms_p = jnp.pad(f_atoms, ((0, n_atoms_p - n_atoms),
                                  (0, node_fdim_p - node_fdim))
                        ).astype(jnp.bfloat16)
    feats_p = jnp.pad(features, ((0, n_mols_p - n_mols),
                                 (0, feat_dim_p - features_dim))
                      ).astype(jnp.bfloat16)

    # Per-molecule scope scalars ([n_mols_p, 1]) replace the dense HBM mask.
    starts = jnp.pad(a_scope_starts.astype(jnp.int32),
                     (0, n_mols_p - n_mols))[:, None]
    sizes = jnp.pad(a_scope_sizes.astype(jnp.int32),
                    (0, n_mols_p - n_mols))[:, None]
    inv_count = 1.0 / jnp.maximum(sizes, 1).astype(jnp.float32)

    row = lambda i: (i, 0)
    full = lambda i: (0, 0)

    out_full = pl.pallas_call(
        _grover_fused_kernel,
        out_shape=jax.ShapeDtypeStruct((n_mols_p, out_pad), jnp.float32),
        grid=(n_mols_p // mol_tile,),
        in_specs=[
            pl.BlockSpec((mol_tile, 1), row),                           # starts
            pl.BlockSpec((mol_tile, 1), row),                           # sizes
            pl.BlockSpec((mol_tile, 1), row),                           # 1/count
            pl.BlockSpec((n_atoms_p, node_fdim_p), full),               # f_atoms
            pl.BlockSpec((node_fdim_p, two_hp), full),                  # w_e (a|b)
            pl.BlockSpec((1, two_hp), full),                            # b_e (a|b)
            pl.BlockSpec((mol_tile, feat_dim_p), row),                  # features
            pl.BlockSpec((hidden_p + feat_dim_p, ffn_hidden_p), full),  # w1a
            pl.BlockSpec((1, ffn_hidden_p), full),                      # b1a
            pl.BlockSpec((hidden_p + feat_dim_p, ffn_hidden_p), full),  # w1b
            pl.BlockSpec((1, ffn_hidden_p), full),                      # b1b
            pl.BlockSpec((ffn_hidden_p, out_pad), full),                # w2a
            pl.BlockSpec((1, out_pad), full),                           # b2a
            pl.BlockSpec((ffn_hidden_p, out_pad), full),                # w2b
            pl.BlockSpec((1, out_pad), full),                           # b2b
        ],
        out_specs=pl.BlockSpec((mol_tile, out_pad), row),
        scratch_shapes=[pltpu.VMEM((n_atoms_p, two_hp), jnp.bfloat16)],
        compiler_params=pltpu.CompilerParams(
            dimension_semantics=("arbitrary",),
            vmem_limit_bytes=_vmem_limit_bytes(),
        ),
    )(starts, sizes, inv_count, f_atoms_p,
      prepared["w_e"], prepared["b_e"], feats_p,
      prepared["w1a"], prepared["b1a"], prepared["w1b"], prepared["b1b"],
      prepared["w2a"], prepared["b2a"], prepared["w2b"], prepared["b2b"])

    return out_full[:n_mols, :output_size]


# --------------------------------------------------------------------------- #
# Parameters + pure-JAX reference (f32) for a correctness check.
# --------------------------------------------------------------------------- #
def make_params(key, node_fdim, hidden, features_dim, ffn_hidden, output_size):
    ks = jax.random.split(key, 8)

    def init(k, shape, fan_in):
        return jax.random.normal(k, shape, jnp.float32) / jnp.sqrt(float(fan_in))

    first_dim = hidden + features_dim   # hidden_size*100 + features_dim
    return {
        # GROVEREmbedding stand-in encoders (see TODO(synk) above)
        "w_ea": init(ks[0], (node_fdim, hidden), node_fdim),
        "b_ea": jnp.zeros((1, hidden), jnp.float32),
        "w_eb": init(ks[1], (node_fdim, hidden), node_fdim),
        "b_eb": jnp.zeros((1, hidden), jnp.float32),
        # mol_atom_from_atom_ffn: Linear -> ReLU -> Linear
        "w1a_h": init(ks[2], (hidden, ffn_hidden), first_dim),
        "w1a_f": init(ks[3], (features_dim, ffn_hidden), first_dim),
        "b1a": jnp.zeros((1, ffn_hidden), jnp.float32),
        "w2a": init(ks[4], (ffn_hidden, output_size), ffn_hidden),
        "b2a": jnp.zeros((1, output_size), jnp.float32),
        # mol_atom_from_bond_ffn
        "w1b_h": init(ks[5], (hidden, ffn_hidden), first_dim),
        "w1b_f": init(ks[6], (features_dim, ffn_hidden), first_dim),
        "b1b": jnp.zeros((1, ffn_hidden), jnp.float32),
        "w2b": init(ks[7], (ffn_hidden, output_size), ffn_hidden),
        "b2b": jnp.zeros((1, output_size), jnp.float32),
    }


def grover_finetune_reference(f_atoms, starts, sizes, features, params):
    emb_a = f_atoms @ params["w_ea"] + params["b_ea"]
    emb_b = f_atoms @ params["w_eb"] + params["b_eb"]
    atom_idx = jnp.arange(f_atoms.shape[0])
    m = ((atom_idx[None, :] >= starts[:, None]) &
         (atom_idx[None, :] < (starts + sizes)[:, None])).astype(jnp.float32)
    m = m / jnp.maximum(sizes, 1).astype(jnp.float32)[:, None]
    mol_a = m @ emb_a
    mol_b = m @ emb_b

    def ffn(mol, wh, wf, b1, w2, b2):
        h = jnp.maximum(mol @ wh + features @ wf + b1, 0.0)
        return h @ w2 + b2

    la = ffn(mol_a, params["w1a_h"], params["w1a_f"], params["b1a"],
             params["w2a"], params["b2a"])
    lb = ffn(mol_b, params["w1b_h"], params["w1b_f"], params["b1b"],
             params["w2b"], params["b2b"])
    return 0.5 * (jax.nn.sigmoid(la) + jax.nn.sigmoid(lb))


if __name__ == "__main__":
    # Toy configuration (hidden_size*100 / ffn_hidden_size*100 -> 128 here).
    node_fdim = 32
    hidden = 128
    features_dim = 16
    ffn_hidden = 128
    output_size = 1

    # 20 molecules; atom index 0 is the GROVER padding atom, so scopes start at 1.
    sizes_list = [5, 7, 9, 6, 8, 10, 4, 7, 6, 9] * 2
    starts_list, pos = [], 1
    for s in sizes_list:
        starts_list.append(pos)
        pos += s
    n_atoms = pos                       # 143
    n_mols = len(sizes_list)            # 20

    key = jax.random.PRNGKey(0)
    k_f, k_feat, k_params = jax.random.split(key, 3)
    f_atoms = jax.random.normal(k_f, (n_atoms, node_fdim), jnp.float32)
    features_batch = jax.random.normal(k_feat, (n_mols, features_dim), jnp.float32)
    starts = jnp.array(starts_list, jnp.int32)
    sizes = jnp.array(sizes_list, jnp.int32)
    params = make_params(k_params, node_fdim, hidden, features_dim,
                         ffn_hidden, output_size)

    # One-time weight fusion/padding/bf16 cast (hoisted out of the call path).
    prepared, dims = prepare_grover_params(params)

    out = grover_finetune_forward(f_atoms, starts, sizes, features_batch,
                                  prepared, dims)
    out = jax.block_until_ready(out)

    ref = grover_finetune_reference(f_atoms, starts, sizes, features_batch, params)

    assert out.shape == (n_mols, output_size)
    assert bool(jnp.all(jnp.isfinite(out)))
    assert bool(jnp.all((out >= 0.0) & (out <= 1.0)))          # averaged sigmoids
    max_err = float(jnp.max(jnp.abs(out - ref)))
    assert max_err < 0.05, f"mismatch vs reference: {max_err}"
    print("KERNEL_OK")
</pallas_src>

<mosaic_0001>
module attributes {stable_mosaic.version = 11 : i64} {
  func.func @_grover_fused_kernel(%arg0: i32, %arg1: memref<24x1xi32, #tpu.memory_space<vmem>>, %arg2: memref<24x1xi32, #tpu.memory_space<vmem>>, %arg3: memref<24x1xf32, #tpu.memory_space<vmem>>, %arg4: memref<256x128xbf16, #tpu.memory_space<vmem>>, %arg5: memref<128x256xbf16, #tpu.memory_space<vmem>>, %arg6: memref<1x256xf32, #tpu.memory_space<vmem>>, %arg7: memref<24x128xbf16, #tpu.memory_space<vmem>>, %arg8: memref<256x128xbf16, #tpu.memory_space<vmem>>, %arg9: memref<1x128xf32, #tpu.memory_space<vmem>>, %arg10: memref<256x128xbf16, #tpu.memory_space<vmem>>, %arg11: memref<1x128xf32, #tpu.memory_space<vmem>>, %arg12: memref<128x128xbf16, #tpu.memory_space<vmem>>, %arg13: memref<1x128xf32, #tpu.memory_space<vmem>>, %arg14: memref<128x128xbf16, #tpu.memory_space<vmem>>, %arg15: memref<1x128xf32, #tpu.memory_space<vmem>>, %arg16: memref<24x128xf32, #tpu.memory_space<vmem>>, %arg17: memref<256x256xbf16, #tpu.memory_space<vmem>>) attributes {dimension_semantics = [#tpu.dimension_semantics<arbitrary>], iteration_bounds = array<i64: 1>, scalar_prefetch = 0 : i64, scratch_operands = 1 : i64, tpu.core_type = #tpu.core_type<tc>, window_params = [{transform_indices = @transform_0, window_bounds = array<i64: 24, 1>}, {transform_indices = @transform_1, window_bounds = array<i64: 24, 1>}, {transform_indices = @transform_2, window_bounds = array<i64: 24, 1>}, {pipeline_mode = #tpu.pipeline_mode<synchronous>, transform_indices = @transform_3, window_bounds = array<i64: 256, 128>}, {pipeline_mode = #tpu.pipeline_mode<synchronous>, transform_indices = @transform_4, window_bounds = array<i64: 128, 256>}, {pipeline_mode = #tpu.pipeline_mode<synchronous>, transform_indices = @transform_5, window_bounds = array<i64: 1, 256>}, {transform_indices = @transform_6, window_bounds = array<i64: 24, 128>}, {pipeline_mode = #tpu.pipeline_mode<synchronous>, transform_indices = @transform_7, window_bounds = array<i64: 256, 128>}, {pipeline_mode = #tpu.pipeline_mode<synchronous>, transform_indices = @transform_8, window_bounds = array<i64: 1, 128>}, {pipeline_mode = #tpu.pipeline_mode<synchronous>, transform_indices = @transform_9, window_bounds = array<i64: 256, 128>}, {pipeline_mode = #tpu.pipeline_mode<synchronous>, transform_indices = @transform_10, window_bounds = array<i64: 1, 128>}, {pipeline_mode = #tpu.pipeline_mode<synchronous>, transform_indices = @transform_11, window_bounds = array<i64: 128, 128>}, {pipeline_mode = #tpu.pipeline_mode<synchronous>, transform_indices = @transform_12, window_bounds = array<i64: 1, 128>}, {pipeline_mode = #tpu.pipeline_mode<synchronous>, transform_indices = @transform_13, window_bounds = array<i64: 128, 128>}, {pipeline_mode = #tpu.pipeline_mode<synchronous>, transform_indices = @transform_14, window_bounds = array<i64: 1, 128>}, {transform_indices = @transform_15, window_bounds = array<i64: 24, 128>}]} {
    %c0_i32 = arith.constant 0 : i32
    %0 = arith.cmpi eq, %arg0, %c0_i32 : i32
    %1 = arith.extui %0 : i1 to i32
    %c0_i32_0 = arith.constant 0 : i32
    %2 = arith.cmpi ne, %1, %c0_i32_0 : i32
    scf.if %2 {
      %c0_43 = arith.constant 0 : index
      %c0_44 = arith.constant 0 : index
      %71 = vector.load %arg4[%c0_43, %c0_44] : memref<256x128xbf16, #tpu.memory_space<vmem>>, vector<256x128xbf16>
      %c0_45 = arith.constant 0 : index
      %c0_46 = arith.constant 0 : index
      %72 = vector.load %arg5[%c0_45, %c0_46] : memref<128x256xbf16, #tpu.memory_space<vmem>>, vector<128x256xbf16>
      %cst_47 = arith.constant dense<0.000000e+00> : vector<256x256xf32>
      %73 = tpu.matmul %71, %72, %cst_47 {dimension_numbers = #tpu.dot_dimension_numbers<[1], [0], [0], [1], [0, 0, 1, 1], [], []>} : vector<256x128xbf16>, vector<128x256xbf16>, vector<256x256xf32> -> vector<256x256xf32>
      %c0_48 = arith.constant 0 : index
      %c0_49 = arith.constant 0 : index
      %74 = vector.load %arg6[%c0_48, %c0_49] : memref<1x256xf32, #tpu.memory_space<vmem>>, vector<1x256xf32>
      %75 = vector.broadcast %74 : vector<1x256xf32> to vector<256x256xf32>
      %76 = arith.addf %73, %75 : vector<256x256xf32>
      %77 = arith.truncf %76 : vector<256x256xf32> to vector<256x256xbf16>
      %c0_50 = arith.constant 0 : index
      %c0_51 = arith.constant 0 : index
      %78 = vector.load %arg17[%c0_50, %c0_51] : memref<256x256xbf16, #tpu.memory_space<vmem>>, vector<256x256xbf16>
      tpu.vector_store %arg17[%c0_50, %c0_51], %77 {strides = array<i32>} : memref<256x256xbf16, #tpu.memory_space<vmem>>, vector<256x256xbf16>,
    } else {
    }
    %3 = tpu.iota {dimensions = array<i32: 1>} : vector<24x256xi32>
    %c0 = arith.constant 0 : index
    %c0_1 = arith.constant 0 : index
    %4 = vector.load %arg1[%c0, %c0_1] : memref<24x1xi32, #tpu.memory_space<vmem>>, vector<24x1xi32>
    %c0_2 = arith.constant 0 : index
    %c0_3 = arith.constant 0 : index
    %5 = vector.load %arg2[%c0_2, %c0_3] : memref<24x1xi32, #tpu.memory_space<vmem>>, vector<24x1xi32>
    %6 = arith.addi %4, %5 : vector<24x1xi32>
    %7 = vector.broadcast %4 : vector<24x1xi32> to vector<24x256xi32>
    %8 = arith.cmpi sge, %3, %7 : vector<24x256xi32>
    %9 = vector.broadcast %6 : vector<24x1xi32> to vector<24x256xi32>
    %10 = arith.cmpi slt, %3, %9 : vector<24x256xi32>
    %11 = arith.andi %8, %10 : vector<24x256xi1>
    %cst = arith.constant 1.000000e+00 : f32
    %cst_4 = arith.constant 0.000000e+00 : f32
    %12 = vector.broadcast %cst : f32 to vector<24x256xf32>
    %13 = vector.broadcast %cst_4 : f32 to vector<24x256xf32>
    %14 = arith.select %11, %12, %13 : vector<24x256xi1>, vector<24x256xf32>
    %15 = arith.truncf %14 : vector<24x256xf32> to vector<24x256xbf16>
    %c0_5 = arith.constant 0 : index
    %c0_6 = arith.constant 0 : index
    %16 = vector.load %arg17[%c0_5, %c0_6] : memref<256x256xbf16, #tpu.memory_space<vmem>>, vector<256x256xbf16>
    %cst_7 = arith.constant dense<0.000000e+00> : vector<24x256xf32>
    %17 = tpu.matmul %15, %16, %cst_7 {dimension_numbers = #tpu.dot_dimension_numbers<[1], [0], [0], [1], [0, 0, 1, 1], [], []>} : vector<24x256xbf16>, vector<256x256xbf16>, vector<24x256xf32> -> vector<24x256xf32>
    %c0_8 = arith.constant 0 : index
    %c0_9 = arith.constant 0 : index
    %18 = vector.load %arg3[%c0_8, %c0_9] : memref<24x1xf32, #tpu.memory_space<vmem>>, vector<24x1xf32>
    %19 = vector.broadcast %18 : vector<24x1xf32> to vector<24x256xf32>
    %20 = arith.mulf %17, %19 : vector<24x256xf32>
    %21 = arith.truncf %20 : vector<24x256xf32> to vector<24x256xbf16>
    %c0_10 = arith.constant 0 : index
    %c0_11 = arith.constant 0 : index
    %22 = vector.load %arg7[%c0_10, %c0_11] : memref<24x128xbf16, #tpu.memory_space<vmem>>, vector<24x128xbf16>
    %23 = vector.extract_strided_slice %21 {offsets = [0, 0], sizes = [24, 128], strides = [1, 1]} : vector<24x256xbf16> to vector<24x128xbf16>
    %24 = tpu.concatenate %23, %22 in 1 : vector<24x128xbf16>, vector<24x128xbf16> -> vector<24x256xbf16>
    %25 = vector.extract_strided_slice %21 {offsets = [0, 128], sizes = [24, 128], strides = [1, 1]} : vector<24x256xbf16> to vector<24x128xbf16>
    %26 = tpu.concatenate %25, %22 in 1 : vector<24x128xbf16>, vector<24x128xbf16> -> vector<24x256xbf16>
    %c0_12 = arith.constant 0 : index
    %c0_13 = arith.constant 0 : index
    %27 = vector.load %arg8[%c0_12, %c0_13] : memref<256x128xbf16, #tpu.memory_space<vmem>>, vector<256x128xbf16>
    %cst_14 = arith.constant dense<0.000000e+00> : vector<24x128xf32>
    %28 = tpu.matmul %24, %27, %cst_14 {dimension_numbers = #tpu.dot_dimension_numbers<[1], [0], [0], [1], [0, 0, 1, 1], [], []>} : vector<24x256xbf16>, vector<256x128xbf16>, vector<24x128xf32> -> vector<24x128xf32>
    %c0_15 = arith.constant 0 : index
    %c0_16 = arith.constant 0 : index
    %29 = vector.load %arg9[%c0_15, %c0_16] : memref<1x128xf32, #tpu.memory_space<vmem>>, vector<1x128xf32>
    %30 = vector.broadcast %29 : vector<1x128xf32> to vector<24x128xf32>
    %31 = arith.addf %28, %30 : vector<24x128xf32>
    %c0_17 = arith.constant 0 : index
    %c0_18 = arith.constant 0 : index
    %32 = vector.load %arg10[%c0_17, %c0_18] : memref<256x128xbf16, #tpu.memory_space<vmem>>, vector<256x128xbf16>
    %cst_19 = arith.constant dense<0.000000e+00> : vector<24x128xf32>
    %33 = tpu.matmul %26, %32, %cst_19 {dimension_numbers = #tpu.dot_dimension_numbers<[1], [0], [0], [1], [0, 0, 1, 1], [], []>} : vector<24x256xbf16>, vector<256x128xbf16>, vector<24x128xf32> -> vector<24x128xf32>
    %c0_20 = arith.constant 0 : index
    %c0_21 = arith.constant 0 : index
    %34 = vector.load %arg11[%c0_20, %c0_21] : memref<1x128xf32, #tpu.memory_space<vmem>>, vector<1x128xf32>
    %35 = vector.broadcast %34 : vector<1x128xf32> to vector<24x128xf32>
    %36 = arith.addf %33, %35 : vector<24x128xf32>
    %cst_22 = arith.constant 0.000000e+00 : f32
    %37 = vector.broadcast %cst_22 : f32 to vector<24x128xf32>
    %38 = arith.maximumf %31, %37 : vector<24x128xf32>
    %39 = arith.truncf %38 : vector<24x128xf32> to vector<24x128xbf16>
    %cst_23 = arith.constant 0.000000e+00 : f32
    %40 = vector.broadcast %cst_23 : f32 to vector<24x128xf32>
    %41 = arith.maximumf %36, %40 : vector<24x128xf32>
    %42 = arith.truncf %41 : vector<24x128xf32> to vector<24x128xbf16>
    %c0_24 = arith.constant 0 : index
    %c0_25 = arith.constant 0 : index
    %43 = vector.load %arg12[%c0_24, %c0_25] : memref<128x128xbf16, #tpu.memory_space<vmem>>, vector<128x128xbf16>
    %cst_26 = arith.constant dense<0.000000e+00> : vector<24x128xf32>
    %44 = tpu.matmul %39, %43, %cst_26 {dimension_numbers = #tpu.dot_dimension_numbers<[1], [0], [0], [1], [0, 0, 1, 1], [], []>} : vector<24x128xbf16>, vector<128x128xbf16>, vector<24x128xf32> -> vector<24x128xf32>
    %c0_27 = arith.constant 0 : index
    %c0_28 = arith.constant 0 : index
    %45 = vector.load %arg13[%c0_27, %c0_28] : memref<1x128xf32, #tpu.memory_space<vmem>>, vector<1x128xf32>
    %46 = vector.broadcast %45 : vector<1x128xf32> to vector<24x128xf32>
    %47 = arith.addf %44, %46 : vector<24x128xf32>
    %c0_29 = arith.constant 0 : index
    %c0_30 = arith.constant 0 : index
    %48 = vector.load %arg14[%c0_29, %c0_30] : memref<128x128xbf16, #tpu.memory_space<vmem>>, vector<128x128xbf16>
    %cst_31 = arith.constant dense<0.000000e+00> : vector<24x128xf32>
    %49 = tpu.matmul %42, %48, %cst_31 {dimension_numbers = #tpu.dot_dimension_numbers<[1], [0], [0], [1], [0, 0, 1, 1], [], []>} : vector<24x128xbf16>, vector<128x128xbf16>, vector<24x128xf32> -> vector<24x128xf32>
    %c0_32 = arith.constant 0 : index
    %c0_33 = arith.constant 0 : index
    %50 = vector.load %arg15[%c0_32, %c0_33] : memref<1x128xf32, #tpu.memory_space<vmem>>, vector<1x128xf32>
    %51 = vector.broadcast %50 : vector<1x128xf32> to vector<24x128xf32>
    %52 = arith.addf %49, %51 : vector<24x128xf32>
    %cst_34 = arith.constant 5.000000e-01 : f32
    %53 = vector.broadcast %cst_34 : f32 to vector<24x128xf32>
    %54 = arith.mulf %53, %47 : vector<24x128xf32>
    %55 = math.tanh %54 : vector<24x128xf32>
    %cst_35 = arith.constant 1.000000e+00 : f32
    %56 = vector.broadcast %cst_35 : f32 to vector<24x128xf32>
    %57 = arith.addf %55, %56 : vector<24x128xf32>
    %cst_36 = arith.constant 5.000000e-01 : f32
    %58 = vector.broadcast %cst_36 : f32 to vector<24x128xf32>
    %59 = arith.mulf %58, %57 : vector<24x128xf32>
    %cst_37 = arith.constant 5.000000e-01 : f32
    %60 = vector.broadcast %cst_37 : f32 to vector<24x128xf32>
    %61 = arith.mulf %60, %52 : vector<24x128xf32>
    %62 = math.tanh %61 : vector<24x128xf32>
    %cst_38 = arith.constant 1.000000e+00 : f32
    %63 = vector.broadcast %cst_38 : f32 to vector<24x128xf32>
    %64 = arith.addf %62, %63 : vector<24x128xf32>
    %cst_39 = arith.constant 5.000000e-01 : f32
    %65 = vector.broadcast %cst_39 : f32 to vector<24x128xf32>
    %66 = arith.mulf %65, %64 : vector<24x128xf32>
    %67 = arith.addf %59, %66 : vector<24x128xf32>
    %cst_40 = arith.constant 5.000000e-01 : f32
    %68 = vector.broadcast %cst_40 : f32 to vector<24x128xf32>
    %69 = arith.mulf %68, %67 : vector<24x128xf32>
    %c0_41 = arith.constant 0 : index
    %c0_42 = arith.constant 0 : index
    %70 = vector.load %arg16[%c0_41, %c0_42] : memref<24x128xf32, #tpu.memory_space<vmem>>, vector<24x128xf32>
    tpu.vector_store %arg16[%c0_41, %c0_42], %69 {strides = array<i32>} : memref<24x128xf32, #tpu.memory_space<vmem>>, vector<24x128xf32>,
    return
  }
  func.func @transform_0(%arg0: i32) -> (i32, i32) {
    %c0_i32 = arith.constant 0 : i32
    %c0_i32_0 = arith.constant 0 : i32
    return %arg0, %c0_i32 : i32, i32
  }
  func.func @transform_1(%arg0: i32) -> (i32, i32) {
    %c0_i32 = arith.constant 0 : i32
    %c0_i32_0 = arith.constant 0 : i32
    return %arg0, %c0_i32 : i32, i32
  }
  func.func @transform_2(%arg0: i32) -> (i32, i32) {
    %c0_i32 = arith.constant 0 : i32
    %c0_i32_0 = arith.constant 0 : i32
    return %arg0, %c0_i32 : i32, i32
  }
  func.func @transform_3(%arg0: i32) -> (i32, i32) {
    %c0_i32 = arith.constant 0 : i32
    %c0_i32_0 = arith.constant 0 : i32
    %c0_i32_1 = arith.constant 0 : i32
    return %c0_i32, %c0_i32_0 : i32, i32
  }
  func.func @transform_4(%arg0: i32) -> (i32, i32) {
    %c0_i32 = arith.constant 0 : i32
    %c0_i32_0 = arith.constant 0 : i32
    %c0_i32_1 = arith.constant 0 : i32
    return %c0_i32, %c0_i32_0 : i32, i32
  }
  func.func @transform_5(%arg0: i32) -> (i32, i32) {
    %c0_i32 = arith.constant 0 : i32
    %c0_i32_0 = arith.constant 0 : i32
    %c0_i32_1 = arith.constant 0 : i32
    return %c0_i32, %c0_i32_0 : i32, i32
  }
  func.func @transform_6(%arg0: i32) -> (i32, i32) {
    %c0_i32 = arith.constant 0 : i32
    %c0_i32_0 = arith.constant 0 : i32
    return %arg0, %c0_i32 : i32, i32
  }
  func.func @transform_7(%arg0: i32) -> (i32, i32) {
    %c0_i32 = arith.constant 0 : i32
    %c0_i32_0 = arith.constant 0 : i32
    %c0_i32_1 = arith.constant 0 : i32
    return %c0_i32, %c0_i32_0 : i32, i32
  }
  func.func @transform_8(%arg0: i32) -> (i32, i32) {
    %c0_i32 = arith.constant 0 : i32
    %c0_i32_0 = arith.constant 0 : i32
    %c0_i32_1 = arith.constant 0 : i32
    return %c0_i32, %c0_i32_0 : i32, i32
  }
  func.func @transform_9(%arg0: i32) -> (i32, i32) {
    %c0_i32 = arith.constant 0 : i32
    %c0_i32_0 = arith.constant 0 : i32
    %c0_i32_1 = arith.constant 0 : i32
    return %c0_i32, %c0_i32_0 : i32, i32
  }
  func.func @transform_10(%arg0: i32) -> (i32, i32) {
    %c0_i32 = arith.constant 0 : i32
    %c0_i32_0 = arith.constant 0 : i32
    %c0_i32_1 = arith.constant 0 : i32
    return %c0_i32, %c0_i32_0 : i32, i32
  }
  func.func @transform_11(%arg0: i32) -> (i32, i32) {
    %c0_i32 = arith.constant 0 : i32
    %c0_i32_0 = arith.constant 0 : i32
    %c0_i32_1 = arith.constant 0 : i32
    return %c0_i32, %c0_i32_0 : i32, i32
  }
  func.func @transform_12(%arg0: i32) -> (i32, i32) {
    %c0_i32 = arith.constant 0 : i32
    %c0_i32_0 = arith.constant 0 : i32
    %c0_i32_1 = arith.constant 0 : i32
    return %c0_i32, %c0_i32_0 : i32, i32
  }
  func.func @transform_13(%arg0: i32) -> (i32, i32) {
    %c0_i32 = arith.constant 0 : i32
    %c0_i32_0 = arith.constant 0 : i32
    %c0_i32_1 = arith.constant 0 : i32
    return %c0_i32, %c0_i32_0 : i32, i32
  }
  func.func @transform_14(%arg0: i32) -> (i32, i32) {
    %c0_i32 = arith.constant 0 : i32
    %c0_i32_0 = arith.constant 0 : i32
    %c0_i32_1 = arith.constant 0 : i32
    return %c0_i32, %c0_i32_0 : i32, i32
  }
  func.func @transform_15(%arg0: i32) -> (i32, i32) {
    %c0_i32 = arith.constant 0 : i32
    %c0_i32_0 = arith.constant 0 : i32
    return %arg0, %c0_i32 : i32, i32
  }
}

</mosaic_0001>

<llo_original>
// kernel: tpu_custom_call.1
$region0: #{tpu_custom_call.1}
  #allocation0 [shape = 'u32[]', space=smem, size = 0x4, offset = 0x4, fixed_abs, tag = 'smem constant byte address 0x4 - core index']
  #allocation1 [shape = 'u32[144,128]{1,0:T(1,128)}', space=vmem, size = 0x12000, scoped, tag = 'internal scratch']
  #allocation2 [shape = 'bf16[256,256]{1,0:T(16,128)(2,1)}', space=vmem, size = 0x20000, scoped, tag = 'scratch operand']
  %s0 = inlined_call_operand.vmem [shape: s32[24,1], index: 0, kind: input, shape index: {}]
  %s1 = inlined_call_operand.vmem [shape: s32[24,1], index: 1, kind: input, shape index: {}]
  %s2 = inlined_call_operand.vmem [shape: f32[24,1], index: 2, kind: input, shape index: {}]
  %s3 = inlined_call_operand.hbm [shape: bf16[256,128], index: 3, kind: input, shape index: {}]
  %s4 = inlined_call_operand.hbm [shape: bf16[128,256], index: 4, kind: input, shape index: {}]
  %s5 = inlined_call_operand.vmem [shape: f32[1,256], index: 5, kind: input, shape index: {}]
  %s6 = inlined_call_operand.vmem [shape: bf16[24,128], index: 6, kind: input, shape index: {}]
  %s7 = inlined_call_operand.hbm [shape: bf16[256,128], index: 7, kind: input, shape index: {}]
  %s8 = inlined_call_operand.vmem [shape: f32[1,128], index: 8, kind: input, shape index: {}]
  %s9 = inlined_call_operand.hbm [shape: bf16[256,128], index: 9, kind: input, shape index: {}]
  %s10 = inlined_call_operand.vmem [shape: f32[1,128], index: 10, kind: input, shape index: {}]
  %s11 = inlined_call_operand.vmem [shape: bf16[128,128], index: 11, kind: input, shape index: {}]
  %s12 = inlined_call_operand.vmem [shape: f32[1,128], index: 12, kind: input, shape index: {}]
  %s13 = inlined_call_operand.hbm [shape: bf16[128,128], index: 13, kind: input, shape index: {}]
  %s14 = inlined_call_operand.vmem [shape: f32[1,128], index: 14, kind: input, shape index: {}]
  %s15 = inlined_call_operand.hbm [shape: f32[24,128], index: 15, kind: output, shape index: {}]
  %s16 = sld [smem:[#allocation0]]
  $region94: #{tpu_custom_call.1} parent=0
    _
  %s18 = ssub.s32 1, %s16
  %s19 = scalar_select 0, %s18, %s16
  $region1: #{tpu_custom_call.1} parent=0
    #allocation3 [shape = 'u8[65536]{0}', space=vmem, size = 0x10000, scoped, tag = 'input window, operand 3, single buffered']
    #allocation4 [shape = 's32[1]{0}', space=sflag, size = 0x4, scoped, tag = 'scoped memory for tpu_custom_call.1']
    #allocation5 [shape = 's32[1]{0}', space=sflag, size = 0x4, scoped, tag = 'scoped memory for tpu_custom_call.1']
    #allocation6 [shape = 'u8[65536]{0}', space=vmem, size = 0x10000, scoped, tag = 'input window, operand 4, single buffered']
    #allocation7 [shape = 's32[1]{0}', space=sflag, size = 0x4, scoped, tag = 'scoped memory for tpu_custom_call.1']
    #allocation8 [shape = 'u8[65536]{0}', space=vmem, size = 0x10000, scoped, tag = 'input window, operand 7, single buffered']
    #allocation9 [shape = 'u8[65536]{0}', space=vmem, size = 0x10000, scoped, tag = 'input window, operand 9, single buffered']
    #allocation10 [shape = 's32[1]{0}', space=sflag, size = 0x4, scoped, tag = 'scoped memory for tpu_custom_call.1']
    #allocation11 [shape = 'u8[32768]{0}', space=vmem, size = 0x8000, scoped, tag = 'input window, operand 13, single buffered']
    #allocation12 [shape = 'u8[12288]{0}', space=vmem, size = 0x3000, scoped, tag = 'output window, operand 0, single buffered']
    %20 = vsyncpa [#allocation4], 0
    %21 = vsyncpa [#allocation7], 0
    %22 = vsyncpa [#allocation10], 0
    %23 = vsyncpa [#allocation5], 0
    // Predicated region
    $region2: #{tpu_custom_call.1} parent=1 // pred_check
      _
    $region3: #{tpu_custom_call.1} parent=1 // pred_check_branch
      %25 = sbr.rel (0) target = $region5
    $region4: #{tpu_custom_call.1} parent=1 // pred_region
      _
    $region5: #{tpu_custom_call.1} parent=1 // pred_fallthru
      _
    // Predicated region
    $region6: #{tpu_custom_call.1} parent=1 // pred_check
      _
    $region7: #{tpu_custom_call.1} parent=1 // pred_check_branch
      %27 = sbr.rel (0) target = $region9
    $region8: #{tpu_custom_call.1} parent=1 // pred_region
      _
    $region9: #{tpu_custom_call.1} parent=1 // pred_fallthru
      _
    // Predicated region
    $region10: #{tpu_custom_call.1} parent=1 // pred_check
      _
    $region11: #{tpu_custom_call.1} parent=1 // pred_check_branch
      %29 = sbr.rel (0) target = $region13
    $region12: #{tpu_custom_call.1} parent=1 // pred_region
      _
    $region13: #{tpu_custom_call.1} parent=1 // pred_fallthru
      _
    // Predicated region
    $region14: #{tpu_custom_call.1} parent=1 // pred_check
      _
    $region15: #{tpu_custom_call.1} parent=1 // pred_check_branch
      %31 = sbr.rel (0) target = $region17
    $region16: #{tpu_custom_call.1} parent=1 // pred_region
      %s33 = ssub.s32 2048, 2048
      %34 = vsyncadd [#allocation4], %s33
      %s35 = sshll.u32 [#allocation3], 4
      %s36 = int_to_ptr.vmem [resolvable:$true] %s35
      %41 = dma.hbm_to_vmem [thread:$0]  %s3, 2048, %s36, [#allocation4], 64, 64, 4
    $region17: #{tpu_custom_call.1} parent=1 // pred_fallthru
      _
    // Predicated region
    $region18: #{tpu_custom_call.1} parent=1 // pred_check
      _
    $region19: #{tpu_custom_call.1} parent=1 // pred_check_branch
      %43 = sbr.rel (0) target = $region21
    $region20: #{tpu_custom_call.1} parent=1 // pred_region
      %s45 = ssub.s32 2048, 2048
      %46 = vsyncadd [#allocation7], %s45
      %s47 = sshll.u32 [#allocation6], 4
      %s48 = int_to_ptr.vmem [resolvable:$true] %s47
      %53 = dma.hbm_to_vmem [thread:$0]  %s4, 2048, %s48, [#allocation7], 128, 128, 8
    $region21: #{tpu_custom_call.1} parent=1 // pred_fallthru
      _
    // Predicated region
    $region22: #{tpu_custom_call.1} parent=1 // pred_check
      _
    $region23: #{tpu_custom_call.1} parent=1 // pred_check_branch
      %55 = sbr.rel (0) target = $region25
    $region24: #{tpu_custom_call.1} parent=1 // pred_region
      _
    $region25: #{tpu_custom_call.1} parent=1 // pred_fallthru
      _
    // Predicated region
    $region26: #{tpu_custom_call.1} parent=1 // pred_check
      _
    $region27: #{tpu_custom_call.1} parent=1 // pred_check_branch
      %57 = sbr.rel (0) target = $region29
    $region28: #{tpu_custom_call.1} parent=1 // pred_region
      _
    $region29: #{tpu_custom_call.1} parent=1 // pred_fallthru
      _
    // Predicated region
    $region30: #{tpu_custom_call.1} parent=1 // pred_check
      _
    $region31: #{tpu_custom_call.1} parent=1 // pred_check_branch
      %59 = sbr.rel (0) target = $region33
    $region32: #{tpu_custom_call.1} parent=1 // pred_region
      %s61 = ssub.s32 2048, 2048
      %62 = vsyncadd [#allocation7], %s61
      %s63 = sshll.u32 [#allocation8], 4
      %s64 = int_to_ptr.vmem [resolvable:$true] %s63
      %69 = dma.hbm_to_vmem [thread:$0]  %s7, 2048, %s64, [#allocation7], 64, 64, 4
    $region33: #{tpu_custom_call.1} parent=1 // pred_fallthru
      _
    // Predicated region
    $region34: #{tpu_custom_call.1} parent=1 // pred_check
      _
    $region35: #{tpu_custom_call.1} parent=1 // pred_check_branch
      %71 = sbr.rel (0) target = $region37
    $region36: #{tpu_custom_call.1} parent=1 // pred_region
      _
    $region37: #{tpu_custom_call.1} parent=1 // pred_fallthru
      _
    // Predicated region
    $region38: #{tpu_custom_call.1} parent=1 // pred_check
      _
    $region39: #{tpu_custom_call.1} parent=1 // pred_check_branch
      %73 = sbr.rel (0) target = $region41
    $region40: #{tpu_custom_call.1} parent=1 // pred_region
      %s75 = ssub.s32 2048, 2048
      %76 = vsyncadd [#allocation10], %s75
      %s77 = sshll.u32 [#allocation9], 4
      %s78 = int_to_ptr.vmem [resolvable:$true] %s77
      %83 = dma.hbm_to_vmem [thread:$0]  %s9, 2048, %s78, [#allocation10], 64, 64, 4
    $region41: #{tpu_custom_call.1} parent=1 // pred_fallthru
      _
    // Predicated region
    $region42: #{tpu_custom_call.1} parent=1 // pred_check
      _
    $region43: #{tpu_custom_call.1} parent=1 // pred_check_branch
      %85 = sbr.rel (0) target = $region45
    $region44: #{tpu_custom_call.1} parent=1 // pred_region
      _
    $region45: #{tpu_custom_call.1} parent=1 // pred_fallthru
      _
    // Predicated region
    $region46: #{tpu_custom_call.1} parent=1 // pred_check
      _
    $region47: #{tpu_custom_call.1} parent=1 // pred_check_branch
      %87 = sbr.rel (0) target = $region49
    $region48: #{tpu_custom_call.1} parent=1 // pred_region
      _
    $region49: #{tpu_custom_call.1} parent=1 // pred_fallthru
      _
    // Predicated region
    $region50: #{tpu_custom_call.1} parent=1 // pred_check
      _
    $region51: #{tpu_custom_call.1} parent=1 // pred_check_branch
      %89 = sbr.rel (0) target = $region53
    $region52: #{tpu_custom_call.1} parent=1 // pred_region
      _
    $region53: #{tpu_custom_call.1} parent=1 // pred_fallthru
      _
    // Predicated region
    $region54: #{tpu_custom_call.1} parent=1 // pred_check
      _
    $region55: #{tpu_custom_call.1} parent=1 // pred_check_branch
      %91 = sbr.rel (0) target = $region57
    $region56: #{tpu_custom_call.1} parent=1 // pred_region
      %s93 = ssub.s32 1024, 1024
      %94 = vsyncadd [#allocation10], %s93
      %s95 = sshll.u32 [#allocation11], 4
      %s96 = int_to_ptr.vmem [resolvable:$true] %s95
      %101 = dma.hbm_to_vmem [thread:$0]  %s13, 1024, %s96, [#allocation10], 64, 64, 4
    $region57: #{tpu_custom_call.1} parent=1 // pred_fallthru
      _
    // Predicated region
    $region58: #{tpu_custom_call.1} parent=1 // pred_check
      _
    $region59: #{tpu_custom_call.1} parent=1 // pred_check_branch
      %103 = sbr.rel (0) target = $region61
    $region60: #{tpu_custom_call.1} parent=1 // pred_region
      _
    $region61: #{tpu_custom_call.1} parent=1 // pred_fallthru
      _
    // Predicated region
    $region62: #{tpu_custom_call.1} parent=1 // pred_check
      _
    $region63: #{tpu_custom_call.1} parent=1 // pred_check_branch
      %105 = sbr.rel (0) target = $region65
    $region64: #{tpu_custom_call.1} parent=1 // pred_region
      %106 = dma.done [#allocation4], 2048
    $region65: #{tpu_custom_call.1} parent=1 // pred_fallthru
      _
    // Predicated region
    $region66: #{tpu_custom_call.1} parent=1 // pred_check
      _
    $region67: #{tpu_custom_call.1} parent=1 // pred_check_branch
      %108 = sbr.rel (0) target = $region69
    $region68: #{tpu_custom_call.1} parent=1 // pred_region
      %109 = dma.done [#allocation7], 2048
    $region69: #{tpu_custom_call.1} parent=1 // pred_fallthru
      _
    // Predicated region
    $region70: #{tpu_custom_call.1} parent=1 // pred_check
      _
    $region71: #{tpu_custom_call.1} parent=1 // pred_check_branch
      %111 = sbr.rel (0) target = $region73
    $region72: #{tpu_custom_call.1} parent=1 // pred_region
      %112 = dma.done [#allocation7], 2048
    $region73: #{tpu_custom_call.1} parent=1 // pred_fallthru
      _
    // Predicated region
    $region74: #{tpu_custom_call.1} parent=1 // pred_check
      _
    $region75: #{tpu_custom_call.1} parent=1 // pred_check_branch
      %114 = sbr.rel (0) target = $region77
    $region76: #{tpu_custom_call.1} parent=1 // pred_region
      %115 = dma.done [#allocation10], 2048
    $region77: #{tpu_custom_call.1} parent=1 // pred_fallthru
      _
    // Predicated region
    $region78: #{tpu_custom_call.1} parent=1 // pred_check
      _
    $region79: #{tpu_custom_call.1} parent=1 // pred_check_branch
      %117 = sbr.rel (0) target = $region81
    $region80: #{tpu_custom_call.1} parent=1 // pred_region
      %118 = dma.done [#allocation10], 1024
    $region81: #{tpu_custom_call.1} parent=1 // pred_fallthru
      _
    %p120 = scmp.eq.s32.totalorder 0, 0
    // Predicated region
    $region82: #{tpu_custom_call.1} parent=1 // pred_check
      %p121 = pneg %p120
    $region83: #{tpu_custom_call.1} parent=1 // pred_check_branch
      %123 = sbr.rel (%p121) target = $region85
    $region84: #{tpu_custom_call.1} parent=1 // pred_region
      %v124 = vld [vmem:[#allocation3] sm:$0xf]
      %v125 = vld [vmem:[#allocation3 + $0x4] sm:$0xf]
      %v126 = vld [vmem:[#allocation3 + $0x8] sm:$0xf]
      %v127 = vld [vmem:[#allocation3 + $0xc] sm:$0xf]
      %v128 = vld [vmem:[#allocation3 + $0x10] sm:$0xf]
      %v129 = vld [vmem:[#allocation3 + $0x14] sm:$0xf]
      %v130 = vld [vmem:[#allocation3 + $0x18] sm:$0xf]
      %v131 = vld [vmem:[#allocation3 + $0x1c] sm:$0xf]
      %v132 = vld [vmem:[#allocation3 + $0x20] sm:$0xf]
      %v133 = vld [vmem:[#allocation3 + $0x24] sm:$0xf]
      %v134 = vld [vmem:[#allocation3 + $0x28] sm:$0xf]
      %v135 = vld [vmem:[#allocation3 + $0x2c] sm:$0xf]
      %v136 = vld [vmem:[#allocation3 + $0x30] sm:$0xf]
      %v137 = vld [vmem:[#allocation3 + $0x34] sm:$0xf]
      %v138 = vld [vmem:[#allocation3 + $0x38] sm:$0xf]
      %v139 = vld [vmem:[#allocation3 + $0x3c] sm:$0xf]
      %v140 = vld [vmem:[#allocation3 + $0x40] sm:$0xf]
      %v141 = vld [vmem:[#allocation3 + $0x44] sm:$0xf]
      %v142 = vld [vmem:[#allocation3 + $0x48] sm:$0xf]
      %v143 = vld [vmem:[#allocation3 + $0x4c] sm:$0xf]
      %v144 = vld [vmem:[#allocation3 + $0x50] sm:$0xf]
      %v145 = vld [vmem:[#allocation3 + $0x54] sm:$0xf]
      %v146 = vld [vmem:[#allocation3 + $0x58] sm:$0xf]
      %v147 = vld [vmem:[#allocation3 + $0x5c] sm:$0xf]
      %v148 = vld [vmem:[#allocation3 + $0x60] sm:$0xf]
      %v149 = vld [vmem:[#allocation3 + $0x64] sm:$0xf]
      %v150 = vld [vmem:[#allocation3 + $0x68] sm:$0xf]
      %v151 = vld [vmem:[#allocation3 + $0x6c] sm:$0xf]
      %v152 = vld [vmem:[#allocation3 + $0x70] sm:$0xf]
      %v153 = vld [vmem:[#allocation3 + $0x74] sm:$0xf]
      %v154 = vld [vmem:[#allocation3 + $0x78] sm:$0xf]
      %v155 = vld [vmem:[#allocation3 + $0x7c] sm:$0xf]
      %v156 = vld [vmem:[#allocation6] sm:$0xff]
      %v157 = vld [vmem:[#allocation6 + $0x8] sm:$0xff]
      %v158 = vld [vmem:[#allocation6 + $0x10] sm:$0xff]
      %v159 = vld [vmem:[#allocation6 + $0x18] sm:$0xff]
      %v160 = vld [vmem:[#allocation6 + $0x20] sm:$0xff]
      %v161 = vld [vmem:[#allocation6 + $0x28] sm:$0xff]
      %v162 = vld [vmem:[#allocation6 + $0x30] sm:$0xff]
      %v163 = vld [vmem:[#allocation6 + $0x38] sm:$0xff]
      %v164 = vld [vmem:[#allocation6 + $0x40] sm:$0xff]
      %v165 = vld [vmem:[#allocation6 + $0x48] sm:$0xff]
      %v166 = vld [vmem:[#allocation6 + $0x50] sm:$0xff]
      %v167 = vld [vmem:[#allocation6 + $0x58] sm:$0xff]
      %v168 = vld [vmem:[#allocation6 + $0x60] sm:$0xff]
      %v169 = vld [vmem:[#allocation6 + $0x68] sm:$0xff]
      %v170 = vld [vmem:[#allocation6 + $0x70] sm:$0xff]
      %v171 = vld [vmem:[#allocation6 + $0x78] sm:$0xff]
      %v172 = vld [vmem:[%s5] sm:$0x3]
      %v174 = vlaneseq
      %v175 = vshrl.u32 %v174, 7
      %v176 = vsub.s32 0, %v175
      %v177 = vrot.slane %v172, %v176
      %v178 = vlaneseq
      %v179 = vshrl.u32 %v178, 7
      %v180 = vsub.s32 1, %v179
      %v181 = vrot.slane %v172, %v180
      %v216 = vunpack.c.l.b16 %v124
      %v217 = vunpack.c.l.b16 %v125
      %v218 = vunpack.c.l.b16 %v126
      %v219 = vunpack.c.l.b16 %v127
      %v220 = vunpack.c.l.b16 %v128
      %v221 = vunpack.c.l.b16 %v129
      %v222 = vunpack.c.l.b16 %v130
      %v223 = vunpack.c.l.b16 %v131
      %v224 = vunpack.c.l.b16 %v132
      %v225 = vunpack.c.l.b16 %v133
      %v226 = vunpack.c.l.b16 %v134
      %v227 = vunpack.c.l.b16 %v135
      %v228 = vunpack.c.l.b16 %v136
      %v229 = vunpack.c.l.b16 %v137
      %v230 = vunpack.c.l.b16 %v138
      %v231 = vunpack.c.l.b16 %v139
      %v232 = vunpack.c.l.b16 %v140
      %v233 = vunpack.c.l.b16 %v141
      %v234 = vunpack.c.l.b16 %v142
      %v235 = vunpack.c.l.b16 %v143
      %v236 = vunpack.c.l.b16 %v144
      %v237 = vunpack.c.l.b16 %v145
      %v238 = vunpack.c.l.b16 %v146
      %v239 = vunpack.c.l.b16 %v147
      %v240 = vunpack.c.l.b16 %v148
      %v241 = vunpack.c.l.b16 %v149
      %v242 = vunpack.c.l.b16 %v150
      %v243 = vunpack.c.l.b16 %v151
      %v244 = vunpack.c.l.b16 %v152
      %v245 = vunpack.c.l.b16 %v153
      %v246 = vunpack.c.l.b16 %v154
      %v247 = vunpack.c.l.b16 %v155
      %v248 = vpack.c.b16 %v217, %v216
      %v249 = vpack.c.b16 %v219, %v218
      %v250 = vpack.c.b16 %v221, %v220
      %v251 = vpack.c.b16 %v223, %v222
      %v252 = vpack.c.b16 %v225, %v224
      %v253 = vpack.c.b16 %v227, %v226
      %v254 = vpack.c.b16 %v229, %v228
      %v255 = vpack.c.b16 %v231, %v230
      %v256 = vpack.c.b16 %v233, %v232
      %v257 = vpack.c.b16 %v235, %v234
      %v258 = vpack.c.b16 %v237, %v236
      %v259 = vpack.c.b16 %v239, %v238
      %v260 = vpack.c.b16 %v241, %v240
      %v261 = vpack.c.b16 %v243, %v242
      %v262 = vpack.c.b16 %v245, %v244
      %v263 = vpack.c.b16 %v247, %v246
      %v296 = vunpack.c.l.b16 %v156
      %v297 = vunpack.c.h.b16 %v156
      %v298 = vunpack.c.l.b16 %v157
      %v299 = vunpack.c.h.b16 %v157
      %v300 = vunpack.c.l.b16 %v158
      %v301 = vunpack.c.h.b16 %v158
      %v302 = vunpack.c.l.b16 %v159
      %v303 = vunpack.c.h.b16 %v159
      %v304 = vunpack.c.l.b16 %v160
      %v305 = vunpack.c.h.b16 %v160
      %v306 = vunpack.c.l.b16 %v161
      %v307 = vunpack.c.h.b16 %v161
      %v308 = vunpack.c.l.b16 %v162
      %v309 = vunpack.c.h.b16 %v162
      %v310 = vunpack.c.l.b16 %v163
      %v311 = vunpack.c.h.b16 %v163
      %v312 = vunpack.c.l.b16 %v164
      %v313 = vunpack.c.h.b16 %v164
      %v314 = vunpack.c.l.b16 %v165
      %v315 = vunpack.c.h.b16 %v165
      %v316 = vunpack.c.l.b16 %v166
      %v317 = vunpack.c.h.b16 %v166
      %v318 = vunpack.c.l.b16 %v167
      %v319 = vunpack.c.h.b16 %v167
      %v320 = vunpack.c.l.b16 %v168
      %v321 = vunpack.c.h.b16 %v168
      %v322 = vunpack.c.l.b16 %v169
      %v323 = vunpack.c.h.b16 %v169
      %v324 = vunpack.c.l.b16 %v170
      %v325 = vunpack.c.h.b16 %v170
      %v326 = vunpack.c.l.b16 %v171
      %v327 = vunpack.c.h.b16 %v171
      %v328 = vpack.c.b16 %v298, %v296
      %v329 = vpack.c.b16 %v299, %v297
      %v330 = vpack.c.b16 %v302, %v300
      %v331 = vpack.c.b16 %v303, %v301
      %v332 = vpack.c.b16 %v306, %v304
      %v333 = vpack.c.b16 %v307, %v305
      %v334 = vpack.c.b16 %v310, %v308
      %v335 = vpack.c.b16 %v311, %v309
      %v336 = vpack.c.b16 %v314, %v312
      %v337 = vpack.c.b16 %v315, %v313
      %v338 = vpack.c.b16 %v318, %v316
      %v339 = vpack.c.b16 %v319, %v317
      %v340 = vpack.c.b16 %v322, %v320
      %v341 = vpack.c.b16 %v323, %v321
      %v342 = vpack.c.b16 %v326, %v324
      %v343 = vpack.c.b16 %v327, %v325
      %360 = vmatprep.subr.bf16.mxu0 %v329
      %361 = vmatpush1.bf16.msra.mxu0 %v328
      %362 = vmatprep.subr.bf16.mxu0 %v331
      %363 = vmatpush1.bf16.msra.mxu0 %v330
      %364 = vmatprep.subr.bf16.mxu0 %v333
      %365 = vmatpush1.bf16.msra.mxu0 %v332
      %366 = vmatprep.subr.bf16.mxu0 %v335
      %367 = vmatpush1.bf16.msra.mxu0 %v334
      %368 = vmatprep.subr.bf16.mxu0 %v337
      %369 = vmatpush1.bf16.msra.mxu0 %v336
      %370 = vmatprep.subr.bf16.mxu0 %v339
      %371 = vmatpush1.bf16.msra.mxu0 %v338
      %372 = vmatprep.subr.bf16.mxu0 %v341
      %373 = vmatpush1.bf16.msra.mxu0 %v340
      %374 = vmatprep.subr.bf16.mxu0 %v343
      %375 = vmatpush1.bf16.msra.mxu0 %v342
      %376 = vmatprep.subr.bf16.mxu0 0
      %377 = vmatpush1.bf16.msra.mxu0 0
      %378 = vmatprep.subr.bf16.mxu0 0
      %379 = vmatpush1.bf16.msra.mxu0 0
      %380 = vmatprep.subr.bf16.mxu0 0
      %381 = vmatpush1.bf16.msra.mxu0 0
      %382 = vmatprep.subr.bf16.mxu0 0
      %383 = vmatpush1.bf16.msra.mxu0 0
      %384 = vmatprep.subr.bf16.mxu0 0
      %385 = vmatpush1.bf16.msra.mxu0 0
      %386 = vmatprep.subr.bf16.mxu0 0
      %387 = vmatpush1.bf16.msra.mxu0 0
      %388 = vmatprep.subr.bf16.mxu0 0
      %389 = vmatpush1.bf16.msra.mxu0 0
      %390 = vmatprep.subr.bf16.mxu0 0
      %391 = vmatpush1.bf16.msra.mxu0 0
      %392 = vmatprep.mubr.bf16.mxu0 0
      %393 = vmatmul.mubr.bf16.gmra.mrb[0].mxu0 %v248
      %v394 = vpop.f32.mrb[0].mxu0
      %v395 = vadd.f32 %v177, %v394
      %v396 = vpop.f32.mrb[0].mxu0
      %v397 = vadd.f32 %v181, %v396
      %v398 = vpop.f32.mrb[0].mxu0
      %v399 = vadd.f32 %v177, %v398
      %v400 = vpop.f32.mrb[0].mxu0
      %v401 = vadd.f32 %v181, %v400
      %402 = vmatprep.mubr.bf16.mxu0 0
      %403 = vmatmul.mubr.bf16.gmra.mrb[0].mxu0 %v249
      %v404 = vpop.f32.mrb[0].mxu0
      %v405 = vadd.f32 %v177, %v404
      %v406 = vpop.f32.mrb[0].mxu0
      %v407 = vadd.f32 %v181, %v406
      %v408 = vpop.f32.mrb[0].mxu0
      %v409 = vadd.f32 %v177, %v408
      %v410 = vpop.f32.mrb[0].mxu0
      %v411 = vadd.f32 %v181, %v410
      %412 = vmatprep.mubr.bf16.mxu0 0
      %413 = vmatmul.mubr.bf16.gmra.mrb[0].mxu0 %v250
      %v414 = vpop.f32.mrb[0].mxu0
      %v415 = vadd.f32 %v177, %v414
      %v416 = vpop.f32.mrb[0].mxu0
      %v417 = vadd.f32 %v181, %v416
      %v418 = vpop.f32.mrb[0].mxu0
      %v419 = vadd.f32 %v177, %v418
      %v420 = vpop.f32.mrb[0].mxu0
      %v421 = vadd.f32 %v181, %v420
      %422 = vmatprep.mubr.bf16.mxu0 0
      %423 = vmatmul.mubr.bf16.gmra.mrb[0].mxu0 %v251
      %v424 = vpop.f32.mrb[0].mxu0
      %v425 = vadd.f32 %v177, %v424
      %v426 = vpop.f32.mrb[0].mxu0
      %v427 = vadd.f32 %v181, %v426
      %v428 = vpop.f32.mrb[0].mxu0
      %v429 = vadd.f32 %v177, %v428
      %v430 = vpop.f32.mrb[0].mxu0
      %v431 = vadd.f32 %v181, %v430
      %432 = vmatprep.mubr.bf16.mxu0 0
      %433 = vmatmul.mubr.bf16.gmra.mrb[0].mxu0 %v252
      %v434 = vpop.f32.mrb[0].mxu0
      %v435 = vadd.f32 %v177, %v434
      %v436 = vpop.f32.mrb[0].mxu0
      %v437 = vadd.f32 %v181, %v436
      %v438 = vpop.f32.mrb[0].mxu0
      %v439 = vadd.f32 %v177, %v438
      %v440 = vpop.f32.mrb[0].mxu0
      %v441 = vadd.f32 %v181, %v440
      %442 = vmatprep.mubr.bf16.mxu0 0
      %443 = vmatmul.mubr.bf16.gmra.mrb[0].mxu0 %v253
      %v444 = vpop.f32.mrb[0].mxu0
      %v445 = vadd.f32 %v177, %v444
      %v446 = vpop.f32.mrb[0].mxu0
      %v447 = vadd.f32 %v181, %v446
      %v448 = vpop.f32.mrb[0].mxu0
      %v449 = vadd.f32 %v177, %v448
      %v450 = vpop.f32.mrb[0].mxu0
      %v451 = vadd.f32 %v181, %v450
      %452 = vmatprep.mubr.bf16.mxu0 0
      %453 = vmatmul.mubr.bf16.gmra.mrb[0].mxu0 %v254
      %v454 = vpop.f32.mrb[0].mxu0
      %v455 = vadd.f32 %v177, %v454
      %v456 = vpop.f32.mrb[0].mxu0
      %v457 = vadd.f32 %v181, %v456
      %v458 = vpop.f32.mrb[0].mxu0
      %v459 = vadd.f32 %v177, %v458
      %v460 = vpop.f32.mrb[0].mxu0
      %v461 = vadd.f32 %v181, %v460
      %462 = vmatprep.mubr.bf16.mxu0 0
      %463 = vmatmul.mubr.bf16.gmra.mrb[0].mxu0 %v255
      %v464 = vpop.f32.mrb[0].mxu0
      %v465 = vadd.f32 %v177, %v464
      %v466 = vpop.f32.mrb[0].mxu0
      %v467 = vadd.f32 %v181, %v466
      %v468 = vpop.f32.mrb[0].mxu0
      %v469 = vadd.f32 %v177, %v468
      %v470 = vpop.f32.mrb[0].mxu0
      %v471 = vadd.f32 %v181, %v470
      %472 = vmatprep.mubr.bf16.mxu0 0
      %473 = vmatmul.mubr.bf16.gmra.mrb[0].mxu0 %v256
      %v474 = vpop.f32.mrb[0].mxu0
      %v475 = vadd.f32 %v177, %v474
      %v476 = vpop.f32.mrb[0].mxu0
      %v477 = vadd.f32 %v181, %v476
      %v478 = vpop.f32.mrb[0].mxu0
      %v479 = vadd.f32 %v177, %v478
      %v480 = vpop.f32.mrb[0].mxu0
      %v481 = vadd.f32 %v181, %v480
      %482 = vmatprep.mubr.bf16.mxu0 0
      %483 = vmatmul.mubr.bf16.gmra.mrb[0].mxu0 %v257
      %v484 = vpop.f32.mrb[0].mxu0
      %v485 = vadd.f32 %v177, %v484
      %v486 = vpop.f32.mrb[0].mxu0
      %v487 = vadd.f32 %v181, %v486
      %v488 = vpop.f32.mrb[0].mxu0
      %v489 = vadd.f32 %v177, %v488
      %v490 = vpop.f32.mrb[0].mxu0
      %v491 = vadd.f32 %v181, %v490
      %492 = vmatprep.mubr.bf16.mxu0 0
      %493 = vmatmul.mubr.bf16.gmra.mrb[0].mxu0 %v258
      %v494 = vpop.f32.mrb[0].mxu0
      %v495 = vadd.f32 %v177, %v494
      %v496 = vpop.f32.mrb[0].mxu0
      %v497 = vadd.f32 %v181, %v496
      %v498 = vpop.f32.mrb[0].mxu0
      %v499 = vadd.f32 %v177, %v498
      %v500 = vpop.f32.mrb[0].mxu0
      %v501 = vadd.f32 %v181, %v500
      %502 = vmatprep.mubr.bf16.mxu0 0
      %503 = vmatmul.mubr.bf16.gmra.mrb[0].mxu0 %v259
      %v504 = vpop.f32.mrb[0].mxu0
      %v505 = vadd.f32 %v177, %v504
      %v506 = vpop.f32.mrb[0].mxu0
      %v507 = vadd.f32 %v181, %v506
      %v508 = vpop.f32.mrb[0].mxu0
      %v509 = vadd.f32 %v177, %v508
      %v510 = vpop.f32.mrb[0].mxu0
      %v511 = vadd.f32 %v181, %v510
      %512 = vmatprep.mubr.bf16.mxu0 0
      %513 = vmatmul.mubr.bf16.gmra.mrb[0].mxu0 %v260
      %v514 = vpop.f32.mrb[0].mxu0
      %v515 = vadd.f32 %v177, %v514
      %v516 = vpop.f32.mrb[0].mxu0
      %v517 = vadd.f32 %v181, %v516
      %v518 = vpop.f32.mrb[0].mxu0
      %v519 = vadd.f32 %v177, %v518
      %v520 = vpop.f32.mrb[0].mxu0
      %v521 = vadd.f32 %v181, %v520
      %522 = vmatprep.mubr.bf16.mxu0 0
      %523 = vmatmul.mubr.bf16.gmra.mrb[0].mxu0 %v261
      %v524 = vpop.f32.mrb[0].mxu0
      %v525 = vadd.f32 %v177, %v524
      %v526 = vpop.f32.mrb[0].mxu0
      %v527 = vadd.f32 %v181, %v526
      %v528 = vpop.f32.mrb[0].mxu0
      %v529 = vadd.f32 %v177, %v528
      %v530 = vpop.f32.mrb[0].mxu0
      %v531 = vadd.f32 %v181, %v530
      %532 = vmatprep.mubr.bf16.mxu0 0
      %533 = vmatmul.mubr.bf16.gmra.mrb[0].mxu0 %v262
      %v534 = vpop.f32.mrb[0].mxu0
      %v535 = vadd.f32 %v177, %v534
      %v536 = vpop.f32.mrb[0].mxu0
      %v537 = vadd.f32 %v181, %v536
      %v538 = vpop.f32.mrb[0].mxu0
      %v539 = vadd.f32 %v177, %v538
      %v540 = vpop.f32.mrb[0].mxu0
      %v541 = vadd.f32 %v181, %v540
      %542 = vmatprep.mubr.bf16.mxu0 0
      %543 = vmatmul.mubr.bf16.gmra.mrb[0].mxu0 %v263
      %v544 = vpop.f32.mrb[0].mxu0
      %v545 = vadd.f32 %v177, %v544
      %v546 = vpop.f32.mrb[0].mxu0
      %v547 = vadd.f32 %v181, %v546
      %v548 = vpop.f32.mrb[0].mxu0
      %v549 = vadd.f32 %v177, %v548
      %v550 = vpop.f32.mrb[0].mxu0
      %v551 = vadd.f32 %v181, %v550
      %552 = vdwg.mxu0
      %v553 = vpack.c.bf16 %v399, %v395
      %v554 = vpack.c.bf16 %v401, %v397
      %v555 = vpack.c.bf16 %v409, %v405
      %v556 = vpack.c.bf16 %v411, %v407
      %v557 = vpack.c.bf16 %v419, %v415
      %v558 = vpack.c.bf16 %v421, %v417
      %v559 = vpack.c.bf16 %v429, %v425
      %v560 = vpack.c.bf16 %v431, %v427
      %v561 = vpack.c.bf16 %v439, %v435
      %v562 = vpack.c.bf16 %v441, %v437
      %v563 = vpack.c.bf16 %v449, %v445
      %v564 = vpack.c.bf16 %v451, %v447
      %v565 = vpack.c.bf16 %v459, %v455
      %v566 = vpack.c.bf16 %v461, %v457
      %v567 = vpack.c.bf16 %v469, %v465
      %v568 = vpack.c.bf16 %v471, %v467
      %v569 = vpack.c.bf16 %v479, %v475
      %v570 = vpack.c.bf16 %v481, %v477
      %v571 = vpack.c.bf16 %v489, %v485
      %v572 = vpack.c.bf16 %v491, %v487
      %v573 = vpack.c.bf16 %v499, %v495
      %v574 = vpack.c.bf16 %v501, %v497
      %v575 = vpack.c.bf16 %v509, %v505
      %v576 = vpack.c.bf16 %v511, %v507
      %v577 = vpack.c.bf16 %v519, %v515
      %v578 = vpack.c.bf16 %v521, %v517
      %v579 = vpack.c.bf16 %v529, %v525
      %v580 = vpack.c.bf16 %v531, %v527
      %v581 = vpack.c.bf16 %v539, %v535
      %v582 = vpack.c.bf16 %v541, %v537
      %v583 = vpack.c.bf16 %v549, %v545
      %v584 = vpack.c.bf16 %v551, %v547
      %585 = vst [vmem:[#allocation2] sm:$0xff] %v553
      %586 = vst [vmem:[#allocation2 + $0x8] sm:$0xff] %v554
      %587 = vst [vmem:[#allocation2 + $0x10] sm:$0xff] %v555
      %588 = vst [vmem:[#allocation2 + $0x18] sm:$0xff] %v556
      %589 = vst [vmem:[#allocation2 + $0x20] sm:$0xff] %v557
      %590 = vst [vmem:[#allocation2 + $0x28] sm:$0xff] %v558
      %591 = vst [vmem:[#allocation2 + $0x30] sm:$0xff] %v559
      %592 = vst [vmem:[#allocation2 + $0x38] sm:$0xff] %v560
      %593 = vst [vmem:[#allocation2 + $0x40] sm:$0xff] %v561
      %594 = vst [vmem:[#allocation2 + $0x48] sm:$0xff] %v562
      %595 = vst [vmem:[#allocation2 + $0x50] sm:$0xff] %v563
      %596 = vst [vmem:[#allocation2 + $0x58] sm:$0xff] %v564
      %597 = vst [vmem:[#allocation2 + $0x60] sm:$0xff] %v565
      %598 = vst [vmem:[#allocation2 + $0x68] sm:$0xff] %v566
      %599 = vst [vmem:[#allocation2 + $0x70] sm:$0xff] %v567
      %600 = vst [vmem:[#allocation2 + $0x78] sm:$0xff] %v568
      %601 = vst [vmem:[#allocation2 + $0x80] sm:$0xff] %v569
      %602 = vst [vmem:[#allocation2 + $0x88] sm:$0xff] %v570
      %603 = vst [vmem:[#allocation2 + $0x90] sm:$0xff] %v571
      %604 = vst [vmem:[#allocation2 + $0x98] sm:$0xff] %v572
      %605 = vst [vmem:[#allocation2 + $0xa0] sm:$0xff] %v573
      %606 = vst [vmem:[#allocation2 + $0xa8] sm:$0xff] %v574
      %607 = vst [vmem:[#allocation2 + $0xb0] sm:$0xff] %v575
      %608 = vst [vmem:[#allocation2 + $0xb8] sm:$0xff] %v576
      %609 = vst [vmem:[#allocation2 + $0xc0] sm:$0xff] %v577
      %610 = vst [vmem:[#allocation2 + $0xc8] sm:$0xff] %v578
      %611 = vst [vmem:[#allocation2 + $0xd0] sm:$0xff] %v579
      %612 = vst [vmem:[#allocation2 + $0xd8] sm:$0xff] %v580
      %613 = vst [vmem:[#allocation2 + $0xe0] sm:$0xff] %v581
      %614 = vst [vmem:[#allocation2 + $0xe8] sm:$0xff] %v582
      %615 = vst [vmem:[#allocation2 + $0xf0] sm:$0xff] %v583
      %616 = vst [vmem:[#allocation2 + $0xf8] sm:$0xff] %v584
    $region85: #{tpu_custom_call.1} parent=1 // pred_fallthru
      _
    %v617 = vlaneseq
    %v618 = vand.u32 %v617, 127
    %v619 = vadd.s32 %v618, 128
    %v620 = vld [vmem:[%s0] sm:$0xff]
    %v621 = vld [vmem:[%s0 + $0x8] sm:$0xff]
    %v622 = vld [vmem:[%s0 + $0x10] sm:$0xff]
    %v623 = vld [vmem:[%s1] sm:$0xff]
    %v624 = vld [vmem:[%s1 + $0x8] sm:$0xff]
    %v625 = vld [vmem:[%s1 + $0x10] sm:$0xff]
    %v626 = vadd.s32 %v620, %v623
    %v627 = vadd.s32 %v621, %v624
    %v628 = vadd.s32 %v622, %v625
    %629 = vset.pattern.permute.xlu0 0
    %630 = vperm.xlu0 %629, %v620
    %v631 = vpop.permute.xlu0 %630
    %632 = vset.pattern.permute.xlu0 0
    %633 = vperm.xlu0 %632, %v621
    %v634 = vpop.permute.xlu0 %633
    %635 = vset.pattern.permute.xlu0 0
    %636 = vperm.xlu0 %635, %v622
    %v637 = vpop.permute.xlu0 %636
    %vm638 = vcmp.ge.s32.totalorder %v618, %v631
    %vm639 = vcmp.ge.s32.totalorder %v619, %v631
    %vm640 = vcmp.ge.s32.totalorder %v618, %v634
    %vm641 = vcmp.ge.s32.totalorder %v619, %v634
    %vm642 = vcmp.ge.s32.totalorder %v618, %v637
    %vm643 = vcmp.ge.s32.totalorder %v619, %v637
    %644 = vset.pattern.permute.xlu0 0
    %645 = vperm.xlu0 %644, %v626
    %v646 = vpop.permute.xlu0 %645
    %647 = vset.pattern.permute.xlu0 0
    %648 = vperm.xlu0 %647, %v627
    %v649 = vpop.permute.xlu0 %648
    %650 = vset.pattern.permute.xlu0 0
    %651 = vperm.xlu0 %650, %v628
    %v652 = vpop.permute.xlu0 %651
    %vm653 = vcmp.lt.s32.totalorder %v618, %v646
    %vm654 = vcmp.lt.s32.totalorder %v619, %v646
    %vm655 = vcmp.lt.s32.totalorder %v618, %v649
    %vm656 = vcmp.lt.s32.totalorder %v619, %v649
    %vm657 = vcmp.lt.s32.totalorder %v618, %v652
    %vm658 = vcmp.lt.s32.totalorder %v619, %v652
    %vm659 = vmand %vm638, %vm653
    %vm660 = vmand %vm639, %vm654
    %vm661 = vmand %vm640, %vm655
    %vm662 = vmand %vm641, %vm656
    %vm663 = vmand %vm642, %vm657
    %vm664 = vmand %vm643, %vm658
    %v665 = vsel %vm659, 1.0, 0.0
    %v666 = vsel %vm660, 1.0, 0.0
    %v667 = vsel %vm661, 1.0, 0.0
    %v668 = vsel %vm662, 1.0, 0.0
    %v669 = vsel %vm663, 1.0, 0.0
    %v670 = vsel %vm664, 1.0, 0.0
    %v671 = vpack.c.bf16 %v667, %v665
    %v672 = vpack.c.bf16 %v668, %v666
    %v673 = vpack.c.bf16 %v669, %v669
    %v674 = vpack.c.bf16 %v670, %v670
    %v675 = vld [vmem:[#allocation2] sm:$0xff]
    %v676 = vld [vmem:[#allocation2 + $0x8] sm:$0xff]
    %v677 = vld [vmem:[#allocation2 + $0x10] sm:$0xff]
    %v678 = vld [vmem:[#allocation2 + $0x18] sm:$0xff]
    %v679 = vld [vmem:[#allocation2 + $0x20] sm:$0xff]
    %v680 = vld [vmem:[#allocation2 + $0x28] sm:$0xff]
    %v681 = vld [vmem:[#allocation2 + $0x30] sm:$0xff]
    %v682 = vld [vmem:[#allocation2 + $0x38] sm:$0xff]
    %v683 = vld [vmem:[#allocation2 + $0x40] sm:$0xff]
    %v684 = vld [vmem:[#allocation2 + $0x48] sm:$0xff]
    %v685 = vld [vmem:[#allocation2 + $0x50] sm:$0xff]
    %v686 = vld [vmem:[#allocation2 + $0x58] sm:$0xff]
    %v687 = vld [vmem:[#allocation2 + $0x60] sm:$0xff]
    %v688 = vld [vmem:[#allocation2 + $0x68] sm:$0xff]
    %v689 = vld [vmem:[#allocation2 + $0x70] sm:$0xff]
    %v690 = vld [vmem:[#allocation2 + $0x78] sm:$0xff]
    %v691 = vld [vmem:[#allocation2 + $0x80] sm:$0xff]
    %v692 = vld [vmem:[#allocation2 + $0x88] sm:$0xff]
    %v693 = vld [vmem:[#allocation2 + $0x90] sm:$0xff]
    %v694 = vld [vmem:[#allocation2 + $0x98] sm:$0xff]
    %v695 = vld [vmem:[#allocation2 + $0xa0] sm:$0xff]
    %v696 = vld [vmem:[#allocation2 + $0xa8] sm:$0xff]
    %v697 = vld [vmem:[#allocation2 + $0xb0] sm:$0xff]
    %v698 = vld [vmem:[#allocation2 + $0xb8] sm:$0xff]
    %v699 = vld [vmem:[#allocation2 + $0xc0] sm:$0xff]
    %v700 = vld [vmem:[#allocation2 + $0xc8] sm:$0xff]
    %v701 = vld [vmem:[#allocation2 + $0xd0] sm:$0xff]
    %v702 = vld [vmem:[#allocation2 + $0xd8] sm:$0xff]
    %v703 = vld [vmem:[#allocation2 + $0xe0] sm:$0xff]
    %v704 = vld [vmem:[#allocation2 + $0xe8] sm:$0xff]
    %v705 = vld [vmem:[#allocation2 + $0xf0] sm:$0xff]
    %v706 = vld [vmem:[#allocation2 + $0xf8] sm:$0xff]
    %707 = vmatprep.subr.bf16.mxu0 %v676
    %708 = vmatpush1.bf16.msra.mxu0 %v675
    %709 = vmatprep.subr.bf16.mxu0 %v678
    %710 = vmatpush1.bf16.msra.mxu0 %v677
    %711 = vmatprep.subr.bf16.mxu0 %v680
    %712 = vmatpush1.bf16.msra.mxu0 %v679
    %713 = vmatprep.subr.bf16.mxu0 %v682
    %714 = vmatpush1.bf16.msra.mxu0 %v681
    %715 = vmatprep.subr.bf16.mxu0 %v684
    %716 = vmatpush1.bf16.msra.mxu0 %v683
    %717 = vmatprep.subr.bf16.mxu0 %v686
    %718 = vmatpush1.bf16.msra.mxu0 %v685
    %719 = vmatprep.subr.bf16.mxu0 %v688
    %720 = vmatpush1.bf16.msra.mxu0 %v687
    %721 = vmatprep.subr.bf16.mxu0 %v690
    %722 = vmatpush1.bf16.msra.mxu0 %v689
    %723 = vmatprep.subr.bf16.mxu0 %v692
    %724 = vmatpush1.bf16.msra.mxu0 %v691
    %725 = vmatprep.subr.bf16.mxu0 %v694
    %726 = vmatpush1.bf16.msra.mxu0 %v693
    %727 = vmatprep.subr.bf16.mxu0 %v696
    %728 = vmatpush1.bf16.msra.mxu0 %v695
    %729 = vmatprep.subr.bf16.mxu0 %v698
    %730 = vmatpush1.bf16.msra.mxu0 %v697
    %731 = vmatprep.subr.bf16.mxu0 %v700
    %732 = vmatpush1.bf16.msra.mxu0 %v699
    %733 = vmatprep.subr.bf16.mxu0 %v702
    %734 = vmatpush1.bf16.msra.mxu0 %v701
    %735 = vmatprep.subr.bf16.mxu0 %v704
    %736 = vmatpush1.bf16.msra.mxu0 %v703
    %737 = vmatprep.subr.bf16.mxu0 %v706
    %738 = vmatpush1.bf16.msra.mxu0 %v705
    %739 = vmatprep.mubr.bf16.mxu0 %v672
    %740 = vmatmul.mubr.bf16.gmra.mrb[0].mxu0 %v671
    %v741 = vpop.f32.mrb[0].mxu0
    %v742 = vadd.f32 0.0, %v741
    %v743 = vpop.f32.mrb[0].mxu0
    %v744 = vadd.f32 0.0, %v743
    %v745 = vpop.f32.mrb[0].mxu0
    %v746 = vadd.f32 0.0, %v745
    %v747 = vpop.f32.mrb[0].mxu0
    %v748 = vadd.f32 0.0, %v747
    %749 = vmatprep.mubr.bf16.mxu0 %v674
    %750 = vmatmul.mubr.bf16.gmra.mrb[0].mxu0 %v673
    %v751 = vpop.f32.mrb[0].mxu0
    %v752 = vadd.f32 0.0, %v751
    %v753 = vpop.f32.mrb[0].mxu0
    %v754 = vadd.f32 0.0, %v753
    %v755 = vpop.f32.mrb[0].mxu0
    %v756 = vpop.f32.mrb[0].mxu0
    %757 = vdwg.mxu0
    %v758 = vld [vmem:[%s2] sm:$0xff]
    %v759 = vld [vmem:[%s2 + $0x8] sm:$0xff]
    %v760 = vld [vmem:[%s2 + $0x10] sm:$0xff]
    %762 = vset.pattern.permute.xlu0 0
    %763 = vperm.xlu0 %762, %v758
    %v764 = vpop.permute.xlu0 %763
    %767 = vset.pattern.permute.xlu0 0
    %768 = vperm.xlu0 %767, %v759
    %v769 = vpop.permute.xlu0 %768
    %772 = vset.pattern.permute.xlu0 0
    %773 = vperm.xlu0 %772, %v760
    %v774 = vpop.permute.xlu0 %773
    %v776 = vmul.f32 %v742, %v764
    %v777 = vmul.f32 %v744, %v764
    %v778 = vmul.f32 %v746, %v769
    %v779 = vmul.f32 %v748, %v769
    %v780 = vmul.f32 %v752, %v774
    %v781 = vmul.f32 %v754, %v774
    %v782 = vpack.c.bf16 %v778, %v776
    %v783 = vpack.c.bf16 %v779, %v777
    %v784 = vpack.c.bf16 %v780, %v780
    %v785 = vpack.c.bf16 %v781, %v781
    %v786 = vld [vmem:[%s6] sm:$0xf]
    %v787 = vld [vmem:[%s6 + $0x4] sm:$0xf]
    %v788 = vld [vmem:[%s6 + $0x8] sm:$0xf]
    %v792 = vunpack.c.l.b16 %v786
    %v793 = vunpack.c.l.b16 %v787
    %v794 = vunpack.c.l.b16 %v788
    %v795 = vpack.c.b16 %v793, %v792
    %v796 = vpack.c.b16 %v794, %v794
    %v799 = vld [vmem:[#allocation8] sm:$0xf]
    %v800 = vld [vmem:[#allocation8 + $0x4] sm:$0xf]
    %v801 = vld [vmem:[#allocation8 + $0x8] sm:$0xf]
    %v802 = vld [vmem:[#allocation8 + $0xc] sm:$0xf]
    %v803 = vld [vmem:[#allocation8 + $0x10] sm:$0xf]
    %v804 = vld [vmem:[#allocation8 + $0x14] sm:$0xf]
    %v805 = vld [vmem:[#allocation8 + $0x18] sm:$0xf]
    %v806 = vld [vmem:[#allocation8 + $0x1c] sm:$0xf]
    %v807 = vld [vmem:[#allocation8 + $0x20] sm:$0xf]
    %v808 = vld [vmem:[#allocation8 + $0x24] sm:$0xf]
    %v809 = vld [vmem:[#allocation8 + $0x28] sm:$0xf]
    %v810 = vld [vmem:[#allocation8 + $0x2c] sm:$0xf]
    %v811 = vld [vmem:[#allocation8 + $0x30] sm:$0xf]
    %v812 = vld [vmem:[#allocation8 + $0x34] sm:$0xf]
    %v813 = vld [vmem:[#allocation8 + $0x38] sm:$0xf]
    %v814 = vld [vmem:[#allocation8 + $0x3c] sm:$0xf]
    %v815 = vld [vmem:[#allocation8 + $0x40] sm:$0xf]
    %v816 = vld [vmem:[#allocation8 + $0x44] sm:$0xf]
    %v817 = vld [vmem:[#allocation8 + $0x48] sm:$0xf]
    %v818 = vld [vmem:[#allocation8 + $0x4c] sm:$0xf]
    %v819 = vld [vmem:[#allocation8 + $0x50] sm:$0xf]
    %v820 = vld [vmem:[#allocation8 + $0x54] sm:$0xf]
    %v821 = vld [vmem:[#allocation8 + $0x58] sm:$0xf]
    %v822 = vld [vmem:[#allocation8 + $0x5c] sm:$0xf]
    %v823 = vld [vmem:[#allocation8 + $0x60] sm:$0xf]
    %v824 = vld [vmem:[#allocation8 + $0x64] sm:$0xf]
    %v825 = vld [vmem:[#allocation8 + $0x68] sm:$0xf]
    %v826 = vld [vmem:[#allocation8 + $0x6c] sm:$0xf]
    %v827 = vld [vmem:[#allocation8 + $0x70] sm:$0xf]
    %v828 = vld [vmem:[#allocation8 + $0x74] sm:$0xf]
    %v829 = vld [vmem:[#allocation8 + $0x78] sm:$0xf]
    %v830 = vld [vmem:[#allocation8 + $0x7c] sm:$0xf]
    %v831 = vld [vmem:[%s8] sm:$0x1]
    %v833 = vlaneseq
    %v834 = vshrl.u32 %v833, 7
    %v835 = vsub.s32 0, %v834
    %v836 = vrot.slane %v831, %v835
    %v870 = vunpack.c.l.b16 %v799
    %v871 = vunpack.c.l.b16 %v800
    %v872 = vunpack.c.l.b16 %v801
    %v873 = vunpack.c.l.b16 %v802
    %v874 = vunpack.c.l.b16 %v803
    %v875 = vunpack.c.l.b16 %v804
    %v876 = vunpack.c.l.b16 %v805
    %v877 = vunpack.c.l.b16 %v806
    %v878 = vunpack.c.l.b16 %v807
    %v879 = vunpack.c.l.b16 %v808
    %v880 = vunpack.c.l.b16 %v809
    %v881 = vunpack.c.l.b16 %v810
    %v882 = vunpack.c.l.b16 %v811
    %v883 = vunpack.c.l.b16 %v812
    %v884 = vunpack.c.l.b16 %v813
    %v885 = vunpack.c.l.b16 %v814
    %v886 = vunpack.c.l.b16 %v815
    %v887 = vunpack.c.l.b16 %v816
    %v888 = vunpack.c.l.b16 %v817
    %v889 = vunpack.c.l.b16 %v818
    %v890 = vunpack.c.l.b16 %v819
    %v891 = vunpack.c.l.b16 %v820
    %v892 = vunpack.c.l.b16 %v821
    %v893 = vunpack.c.l.b16 %v822
    %v894 = vunpack.c.l.b16 %v823
    %v895 = vunpack.c.l.b16 %v824
    %v896 = vunpack.c.l.b16 %v825
    %v897 = vunpack.c.l.b16 %v826
    %v898 = vunpack.c.l.b16 %v827
    %v899 = vunpack.c.l.b16 %v828
    %v900 = vunpack.c.l.b16 %v829
    %v901 = vunpack.c.l.b16 %v830
    %v902 = vpack.c.b16 %v871, %v870
    %v903 = vpack.c.b16 %v873, %v872
    %v904 = vpack.c.b16 %v875, %v874
    %v905 = vpack.c.b16 %v877, %v876
    %v906 = vpack.c.b16 %v879, %v878
    %v907 = vpack.c.b16 %v881, %v880
    %v908 = vpack.c.b16 %v883, %v882
    %v909 = vpack.c.b16 %v885, %v884
    %v910 = vpack.c.b16 %v887, %v886
    %v911 = vpack.c.b16 %v889, %v888
    %v912 = vpack.c.b16 %v891, %v890
    %v913 = vpack.c.b16 %v893, %v892
    %v914 = vpack.c.b16 %v895, %v894
    %v915 = vpack.c.b16 %v897, %v896
    %v916 = vpack.c.b16 %v899, %v898
    %v917 = vpack.c.b16 %v901, %v900
    %934 = vmatprep.subr.bf16.mxu0 0
    %935 = vmatpush1.bf16.msra.mxu0 %v902
    %936 = vmatprep.subr.bf16.mxu0 0
    %937 = vmatpush1.bf16.msra.mxu0 %v903
    %938 = vmatprep.subr.bf16.mxu0 0
    %939 = vmatpush1.bf16.msra.mxu0 %v904
    %940 = vmatprep.subr.bf16.mxu0 0
    %941 = vmatpush1.bf16.msra.mxu0 %v905
    %942 = vmatprep.subr.bf16.mxu0 0
    %943 = vmatpush1.bf16.msra.mxu0 %v906
    %944 = vmatprep.subr.bf16.mxu0 0
    %945 = vmatpush1.bf16.msra.mxu0 %v907
    %946 = vmatprep.subr.bf16.mxu0 0
    %947 = vmatpush1.bf16.msra.mxu0 %v908
    %948 = vmatprep.subr.bf16.mxu0 0
    %949 = vmatpush1.bf16.msra.mxu0 %v909
    %950 = vmatprep.subr.bf16.mxu0 0
    %951 = vmatpush1.bf16.msra.mxu0 %v910
    %952 = vmatprep.subr.bf16.mxu0 0
    %953 = vmatpush1.bf16.msra.mxu0 %v911
    %954 = vmatprep.subr.bf16.mxu0 0
    %955 = vmatpush1.bf16.msra.mxu0 %v912
    %956 = vmatprep.subr.bf16.mxu0 0
    %957 = vmatpush1.bf16.msra.mxu0 %v913
    %958 = vmatprep.subr.bf16.mxu0 0
    %959 = vmatpush1.bf16.msra.mxu0 %v914
    %960 = vmatprep.subr.bf16.mxu0 0
    %961 = vmatpush1.bf16.msra.mxu0 %v915
    %962 = vmatprep.subr.bf16.mxu0 0
    %963 = vmatpush1.bf16.msra.mxu0 %v916
    %964 = vmatprep.subr.bf16.mxu0 0
    %965 = vmatpush1.bf16.msra.mxu0 %v917
    %966 = vmatprep.mubr.bf16.mxu0 %v795
    %967 = vmatmul.mubr.bf16.gmra.mrb[0].mxu0 %v782
    %v968 = vpop.f32.mrb[0].mxu0
    %v969 = vadd.f32 %v836, %v968
    %v970 = vpop.f32.mrb[0].mxu0
    %v971 = vpop.f32.mrb[0].mxu0
    %v972 = vadd.f32 %v836, %v971
    %v973 = vpop.f32.mrb[0].mxu0
    %974 = vmatprep.mubr.bf16.mxu0 %v796
    %975 = vmatmul.mubr.bf16.gmra.mrb[0].mxu0 %v784
    %v976 = vpop.f32.mrb[0].mxu0
    %v977 = vadd.f32 %v836, %v976
    %v978 = vpop.f32.mrb[0].mxu0
    %v979 = vpop.f32.mrb[0].mxu0
    %v980 = vpop.f32.mrb[0].mxu0
    %981 = vdwg.mxu0
    %v982 = vld [vmem:[#allocation9] sm:$0xf]
    %v983 = vld [vmem:[#allocation9 + $0x4] sm:$0xf]
    %v984 = vld [vmem:[#allocation9 + $0x8] sm:$0xf]
    %v985 = vld [vmem:[#allocation9 + $0xc] sm:$0xf]
    %v986 = vld [vmem:[#allocation9 + $0x10] sm:$0xf]
    %v987 = vld [vmem:[#allocation9 + $0x14] sm:$0xf]
    %v988 = vld [vmem:[#allocation9 + $0x18] sm:$0xf]
    %v989 = vld [vmem:[#allocation9 + $0x1c] sm:$0xf]
    %v990 = vld [vmem:[#allocation9 + $0x20] sm:$0xf]
    %v991 = vld [vmem:[#allocation9 + $0x24] sm:$0xf]
    %v992 = vld [vmem:[#allocation9 + $0x28] sm:$0xf]
    %v993 = vld [vmem:[#allocation9 + $0x2c] sm:$0xf]
    %v994 = vld [vmem:[#allocation9 + $0x30] sm:$0xf]
    %v995 = vld [vmem:[#allocation9 + $0x34] sm:$0xf]
    %v996 = vld [vmem:[#allocation9 + $0x38] sm:$0xf]
    %v997 = vld [vmem:[#allocation9 + $0x3c] sm:$0xf]
    %v998 = vld [vmem:[#allocation9 + $0x40] sm:$0xf]
    %v999 = vld [vmem:[#allocation9 + $0x44] sm:$0xf]
    %v1000 = vld [vmem:[#allocation9 + $0x48] sm:$0xf]
    %v1001 = vld [vmem:[#allocation9 + $0x4c] sm:$0xf]
    %v1002 = vld [vmem:[#allocation9 + $0x50] sm:$0xf]
    %v1003 = vld [vmem:[#allocation9 + $0x54] sm:$0xf]
    %v1004 = vld [vmem:[#allocation9 + $0x58] sm:$0xf]
    %v1005 = vld [vmem:[#allocation9 + $0x5c] sm:$0xf]
    %v1006 = vld [vmem:[#allocation9 + $0x60] sm:$0xf]
    %v1007 = vld [vmem:[#allocation9 + $0x64] sm:$0xf]
    %v1008 = vld [vmem:[#allocation9 + $0x68] sm:$0xf]
    %v1009 = vld [vmem:[#allocation9 + $0x6c] sm:$0xf]
    %v1010 = vld [vmem:[#allocation9 + $0x70] sm:$0xf]
    %v1011 = vld [vmem:[#allocation9 + $0x74] sm:$0xf]
    %v1012 = vld [vmem:[#allocation9 + $0x78] sm:$0xf]
    %v1013 = vld [vmem:[#allocation9 + $0x7c] sm:$0xf]
    %v1014 = vld [vmem:[%s10] sm:$0x1]
    %v1016 = vlaneseq
    %v1017 = vshrl.u32 %v1016, 7
    %v1018 = vsub.s32 0, %v1017
    %v1019 = vrot.slane %v1014, %v1018
    %v1053 = vunpack.c.l.b16 %v982
    %v1054 = vunpack.c.l.b16 %v983
    %v1055 = vunpack.c.l.b16 %v984
    %v1056 = vunpack.c.l.b16 %v985
    %v1057 = vunpack.c.l.b16 %v986
    %v1058 = vunpack.c.l.b16 %v987
    %v1059 = vunpack.c.l.b16 %v988
    %v1060 = vunpack.c.l.b16 %v989
    %v1061 = vunpack.c.l.b16 %v990
    %v1062 = vunpack.c.l.b16 %v991
    %v1063 = vunpack.c.l.b16 %v992
    %v1064 = vunpack.c.l.b16 %v993
    %v1065 = vunpack.c.l.b16 %v994
    %v1066 = vunpack.c.l.b16 %v995
    %v1067 = vunpack.c.l.b16 %v996
    %v1068 = vunpack.c.l.b16 %v997
    %v1069 = vunpack.c.l.b16 %v998
    %v1070 = vunpack.c.l.b16 %v999
    %v1071 = vunpack.c.l.b16 %v1000
    %v1072 = vunpack.c.l.b16 %v1001
    %v1073 = vunpack.c.l.b16 %v1002
    %v1074 = vunpack.c.l.b16 %v1003
    %v1075 = vunpack.c.l.b16 %v1004
    %v1076 = vunpack.c.l.b16 %v1005
    %v1077 = vunpack.c.l.b16 %v1006
    %v1078 = vunpack.c.l.b16 %v1007
    %v1079 = vunpack.c.l.b16 %v1008
    %v1080 = vunpack.c.l.b16 %v1009
    %v1081 = vunpack.c.l.b16 %v1010
    %v1082 = vunpack.c.l.b16 %v1011
    %v1083 = vunpack.c.l.b16 %v1012
    %v1084 = vunpack.c.l.b16 %v1013
    %v1085 = vpack.c.b16 %v1054, %v1053
    %v1086 = vpack.c.b16 %v1056, %v1055
    %v1087 = vpack.c.b16 %v1058, %v1057
    %v1088 = vpack.c.b16 %v1060, %v1059
    %v1089 = vpack.c.b16 %v1062, %v1061
    %v1090 = vpack.c.b16 %v1064, %v1063
    %v1091 = vpack.c.b16 %v1066, %v1065
    %v1092 = vpack.c.b16 %v1068, %v1067
    %v1093 = vpack.c.b16 %v1070, %v1069
    %v1094 = vpack.c.b16 %v1072, %v1071
    %v1095 = vpack.c.b16 %v1074, %v1073
    %v1096 = vpack.c.b16 %v1076, %v1075
    %v1097 = vpack.c.b16 %v1078, %v1077
    %v1098 = vpack.c.b16 %v1080, %v1079
    %v1099 = vpack.c.b16 %v1082, %v1081
    %v1100 = vpack.c.b16 %v1084, %v1083
    %1117 = vmatprep.subr.bf16.mxu0 0
    %1118 = vmatpush1.bf16.msra.mxu0 %v1085
    %1119 = vmatprep.subr.bf16.mxu0 0
    %1120 = vmatpush1.bf16.msra.mxu0 %v1086
    %1121 = vmatprep.subr.bf16.mxu0 0
    %1122 = vmatpush1.bf16.msra.mxu0 %v1087
    %1123 = vmatprep.subr.bf16.mxu0 0
    %1124 = vmatpush1.bf16.msra.mxu0 %v1088
    %1125 = vmatprep.subr.bf16.mxu0 0
    %1126 = vmatpush1.bf16.msra.mxu0 %v1089
    %1127 = vmatprep.subr.bf16.mxu0 0
    %1128 = vmatpush1.bf16.msra.mxu0 %v1090
    %1129 = vmatprep.subr.bf16.mxu0 0
    %1130 = vmatpush1.bf16.msra.mxu0 %v1091
    %1131 = vmatprep.subr.bf16.mxu0 0
    %1132 = vmatpush1.bf16.msra.mxu0 %v1092
    %1133 = vmatprep.subr.bf16.mxu0 0
    %1134 = vmatpush1.bf16.msra.mxu0 %v1093
    %1135 = vmatprep.subr.bf16.mxu0 0
    %1136 = vmatpush1.bf16.msra.mxu0 %v1094
    %1137 = vmatprep.subr.bf16.mxu0 0
    %1138 = vmatpush1.bf16.msra.mxu0 %v1095
    %1139 = vmatprep.subr.bf16.mxu0 0
    %1140 = vmatpush1.bf16.msra.mxu0 %v1096
    %1141 = vmatprep.subr.bf16.mxu0 0
    %1142 = vmatpush1.bf16.msra.mxu0 %v1097
    %1143 = vmatprep.subr.bf16.mxu0 0
    %1144 = vmatpush1.bf16.msra.mxu0 %v1098
    %1145 = vmatprep.subr.bf16.mxu0 0
    %1146 = vmatpush1.bf16.msra.mxu0 %v1099
    %1147 = vmatprep.subr.bf16.mxu0 0
    %1148 = vmatpush1.bf16.msra.mxu0 %v1100
    %1149 = vmatprep.mubr.bf16.mxu0 %v795
    %1150 = vmatmul.mubr.bf16.gmra.mrb[0].mxu0 %v783
    %v1151 = vpop.f32.mrb[0].mxu0
    %v1152 = vadd.f32 %v1019, %v1151
    %v1153 = vpop.f32.mrb[0].mxu0
    %v1154 = vpop.f32.mrb[0].mxu0
    %v1155 = vadd.f32 %v1019, %v1154
    %v1156 = vpop.f32.mrb[0].mxu0
    %1157 = vmatprep.mubr.bf16.mxu0 %v796
    %1158 = vmatmul.mubr.bf16.gmra.mrb[0].mxu0 %v785
    %v1159 = vpop.f32.mrb[0].mxu0
    %v1160 = vadd.f32 %v1019, %v1159
    %v1161 = vpop.f32.mrb[0].mxu0
    %v1162 = vpop.f32.mrb[0].mxu0
    %v1163 = vpop.f32.mrb[0].mxu0
    %1164 = vdwg.mxu0
    %v1165 = vmax.f32 %v969, 0.0
    %v1166 = vmax.f32 %v972, 0.0
    %v1167 = vmax.f32 %v977, 0.0
    %v1168 = vpack.c.bf16 %v1166, %v1165
    %v1169 = vpack.c.bf16 %v1167, %v1167
    %v1170 = vmax.f32 %v1152, 0.0
    %v1171 = vmax.f32 %v1155, 0.0
    %v1172 = vmax.f32 %v1160, 0.0
    %v1173 = vpack.c.bf16 %v1171, %v1170
    %v1174 = vpack.c.bf16 %v1172, %v1172
    %v1175 = vld [vmem:[%s11] sm:$0xf]
    %v1176 = vld [vmem:[%s11 + $0x4] sm:$0xf]
    %v1177 = vld [vmem:[%s11 + $0x8] sm:$0xf]
    %v1178 = vld [vmem:[%s11 + $0xc] sm:$0xf]
    %v1179 = vld [vmem:[%s11 + $0x10] sm:$0xf]
    %v1180 = vld [vmem:[%s11 + $0x14] sm:$0xf]
    %v1181 = vld [vmem:[%s11 + $0x18] sm:$0xf]
    %v1182 = vld [vmem:[%s11 + $0x1c] sm:$0xf]
    %v1183 = vld [vmem:[%s11 + $0x20] sm:$0xf]
    %v1184 = vld [vmem:[%s11 + $0x24] sm:$0xf]
    %v1185 = vld [vmem:[%s11 + $0x28] sm:$0xf]
    %v1186 = vld [vmem:[%s11 + $0x2c] sm:$0xf]
    %v1187 = vld [vmem:[%s11 + $0x30] sm:$0xf]
    %v1188 = vld [vmem:[%s11 + $0x34] sm:$0xf]
    %v1189 = vld [vmem:[%s11 + $0x38] sm:$0xf]
    %v1190 = vld [vmem:[%s11 + $0x3c] sm:$0xf]
    %v1191 = vld [vmem:[%s12] sm:$0x1]
    %v1193 = vlaneseq
    %v1194 = vshrl.u32 %v1193, 7
    %v1195 = vsub.s32 0, %v1194
    %v1196 = vrot.slane %v1191, %v1195
    %v1214 = vunpack.c.l.b16 %v1175
    %v1215 = vunpack.c.l.b16 %v1176
    %v1216 = vunpack.c.l.b16 %v1177
    %v1217 = vunpack.c.l.b16 %v1178
    %v1218 = vunpack.c.l.b16 %v1179
    %v1219 = vunpack.c.l.b16 %v1180
    %v1220 = vunpack.c.l.b16 %v1181
    %v1221 = vunpack.c.l.b16 %v1182
    %v1222 = vunpack.c.l.b16 %v1183
    %v1223 = vunpack.c.l.b16 %v1184
    %v1224 = vunpack.c.l.b16 %v1185
    %v1225 = vunpack.c.l.b16 %v1186
    %v1226 = vunpack.c.l.b16 %v1187
    %v1227 = vunpack.c.l.b16 %v1188
    %v1228 = vunpack.c.l.b16 %v1189
    %v1229 = vunpack.c.l.b16 %v1190
    %v1230 = vpack.c.b16 %v1215, %v1214
    %v1231 = vpack.c.b16 %v1217, %v1216
    %v1232 = vpack.c.b16 %v1219, %v1218
    %v1233 = vpack.c.b16 %v1221, %v1220
    %v1234 = vpack.c.b16 %v1223, %v1222
    %v1235 = vpack.c.b16 %v1225, %v1224
    %v1236 = vpack.c.b16 %v1227, %v1226
    %v1237 = vpack.c.b16 %v1229, %v1228
    %1246 = vmatprep.subr.bf16.mxu0 0
    %1247 = vmatpush1.bf16.msra.mxu0 %v1230
    %1248 = vmatprep.subr.bf16.mxu0 0
    %1249 = vmatpush1.bf16.msra.mxu0 %v1231
    %1250 = vmatprep.subr.bf16.mxu0 0
    %1251 = vmatpush1.bf16.msra.mxu0 %v1232
    %1252 = vmatprep.subr.bf16.mxu0 0
    %1253 = vmatpush1.bf16.msra.mxu0 %v1233
    %1254 = vmatprep.subr.bf16.mxu0 0
    %1255 = vmatpush1.bf16.msra.mxu0 %v1234
    %1256 = vmatprep.subr.bf16.mxu0 0
    %1257 = vmatpush1.bf16.msra.mxu0 %v1235
    %1258 = vmatprep.subr.bf16.mxu0 0
    %1259 = vmatpush1.bf16.msra.mxu0 %v1236
    %1260 = vmatprep.subr.bf16.mxu0 0
    %1261 = vmatpush1.bf16.msra.mxu0 %v1237
    %1262 = vmatprep.subr.bf16.mxu0 0
    %1263 = vmatpush1.bf16.msra.mxu0 0
    %1264 = vmatprep.subr.bf16.mxu0 0
    %1265 = vmatpush1.bf16.msra.mxu0 0
    %1266 = vmatprep.subr.bf16.mxu0 0
    %1267 = vmatpush1.bf16.msra.mxu0 0
    %1268 = vmatprep.subr.bf16.mxu0 0
    %1269 = vmatpush1.bf16.msra.mxu0 0
    %1270 = vmatprep.subr.bf16.mxu0 0
    %1271 = vmatpush1.bf16.msra.mxu0 0
    %1272 = vmatprep.subr.bf16.mxu0 0
    %1273 = vmatpush1.bf16.msra.mxu0 0
    %1274 = vmatprep.subr.bf16.mxu0 0
    %1275 = vmatpush1.bf16.msra.mxu0 0
    %1276 = vmatprep.subr.bf16.mxu0 0
    %1277 = vmatpush1.bf16.msra.mxu0 0
    %1278 = vmatprep.mubr.bf16.mxu0 0
    %1279 = vmatmul.mubr.bf16.gmra.mrb[0].mxu0 %v1168
    %v1280 = vpop.f32.mrb[0].mxu0
    %v1281 = vadd.f32 %v1196, %v1280
    %v1282 = vpop.f32.mrb[0].mxu0
    %v1283 = vpop.f32.mrb[0].mxu0
    %v1284 = vadd.f32 %v1196, %v1283
    %v1285 = vpop.f32.mrb[0].mxu0
    %1286 = vmatprep.mubr.bf16.mxu0 0
    %1287 = vmatmul.mubr.bf16.gmra.mrb[0].mxu0 %v1169
    %v1288 = vpop.f32.mrb[0].mxu0
    %v1289 = vadd.f32 %v1196, %v1288
    %v1290 = vpop.f32.mrb[0].mxu0
    %v1291 = vpop.f32.mrb[0].mxu0
    %v1292 = vpop.f32.mrb[0].mxu0
    %1293 = vdwg.mxu0
    %v1294 = vld [vmem:[#allocation11] sm:$0xf]
    %v1295 = vld [vmem:[#allocation11 + $0x4] sm:$0xf]
    %v1296 = vld [vmem:[#allocation11 + $0x8] sm:$0xf]
    %v1297 = vld [vmem:[#allocation11 + $0xc] sm:$0xf]
    %v1298 = vld [vmem:[#allocation11 + $0x10] sm:$0xf]
    %v1299 = vld [vmem:[#allocation11 + $0x14] sm:$0xf]
    %v1300 = vld [vmem:[#allocation11 + $0x18] sm:$0xf]
    %v1301 = vld [vmem:[#allocation11 + $0x1c] sm:$0xf]
    %v1302 = vld [vmem:[#allocation11 + $0x20] sm:$0xf]
    %v1303 = vld [vmem:[#allocation11 + $0x24] sm:$0xf]
    %v1304 = vld [vmem:[#allocation11 + $0x28] sm:$0xf]
    %v1305 = vld [vmem:[#allocation11 + $0x2c] sm:$0xf]
    %v1306 = vld [vmem:[#allocation11 + $0x30] sm:$0xf]
    %v1307 = vld [vmem:[#allocation11 + $0x34] sm:$0xf]
    %v1308 = vld [vmem:[#allocation11 + $0x38] sm:$0xf]
    %v1309 = vld [vmem:[#allocation11 + $0x3c] sm:$0xf]
    %v1310 = vld [vmem:[%s14] sm:$0x1]
    %v1312 = vlaneseq
    %v1313 = vshrl.u32 %v1312, 7
    %v1314 = vsub.s32 0, %v1313
    %v1315 = vrot.slane %v1310, %v1314
    %v1333 = vunpack.c.l.b16 %v1294
    %v1334 = vunpack.c.l.b16 %v1295
    %v1335 = vunpack.c.l.b16 %v1296
    %v1336 = vunpack.c.l.b16 %v1297
    %v1337 = vunpack.c.l.b16 %v1298
    %v1338 = vunpack.c.l.b16 %v1299
    %v1339 = vunpack.c.l.b16 %v1300
    %v1340 = vunpack.c.l.b16 %v1301
    %v1341 = vunpack.c.l.b16 %v1302
    %v1342 = vunpack.c.l.b16 %v1303
    %v1343 = vunpack.c.l.b16 %v1304
    %v1344 = vunpack.c.l.b16 %v1305
    %v1345 = vunpack.c.l.b16 %v1306
    %v1346 = vunpack.c.l.b16 %v1307
    %v1347 = vunpack.c.l.b16 %v1308
    %v1348 = vunpack.c.l.b16 %v1309
    %v1349 = vpack.c.b16 %v1334, %v1333
    %v1350 = vpack.c.b16 %v1336, %v1335
    %v1351 = vpack.c.b16 %v1338, %v1337
    %v1352 = vpack.c.b16 %v1340, %v1339
    %v1353 = vpack.c.b16 %v1342, %v1341
    %v1354 = vpack.c.b16 %v1344, %v1343
    %v1355 = vpack.c.b16 %v1346, %v1345
    %v1356 = vpack.c.b16 %v1348, %v1347
    %1365 = vmatprep.subr.bf16.mxu0 0
    %1366 = vmatpush1.bf16.msra.mxu0 %v1349
    %1367 = vmatprep.subr.bf16.mxu0 0
    %1368 = vmatpush1.bf16.msra.mxu0 %v1350
    %1369 = vmatprep.subr.bf16.mxu0 0
    %1370 = vmatpush1.bf16.msra.mxu0 %v1351
    %1371 = vmatprep.subr.bf16.mxu0 0
    %1372 = vmatpush1.bf16.msra.mxu0 %v1352
    %1373 = vmatprep.subr.bf16.mxu0 0
    %1374 = vmatpush1.bf16.msra.mxu0 %v1353
    %1375 = vmatprep.subr.bf16.mxu0 0
    %1376 = vmatpush1.bf16.msra.mxu0 %v1354
    %1377 = vmatprep.subr.bf16.mxu0 0
    %1378 = vmatpush1.bf16.msra.mxu0 %v1355
    %1379 = vmatprep.subr.bf16.mxu0 0
    %1380 = vmatpush1.bf16.msra.mxu0 %v1356
    %1381 = vmatprep.subr.bf16.mxu0 0
    %1382 = vmatpush1.bf16.msra.mxu0 0
    %1383 = vmatprep.subr.bf16.mxu0 0
    %1384 = vmatpush1.bf16.msra.mxu0 0
    %1385 = vmatprep.subr.bf16.mxu0 0
    %1386 = vmatpush1.bf16.msra.mxu0 0
    %1387 = vmatprep.subr.bf16.mxu0 0
    %1388 = vmatpush1.bf16.msra.mxu0 0
    %1389 = vmatprep.subr.bf16.mxu0 0
    %1390 = vmatpush1.bf16.msra.mxu0 0
    %1391 = vmatprep.subr.bf16.mxu0 0
    %1392 = vmatpush1.bf16.msra.mxu0 0
    %1393 = vmatprep.subr.bf16.mxu0 0
    %1394 = vmatpush1.bf16.msra.mxu0 0
    %1395 = vmatprep.subr.bf16.mxu0 0
    %1396 = vmatpush1.bf16.msra.mxu0 0
    %1397 = vmatprep.mubr.bf16.mxu0 0
    %1398 = vmatmul.mubr.bf16.gmra.mrb[0].mxu0 %v1173
    %v1399 = vpop.f32.mrb[0].mxu0
    %v1400 = vadd.f32 %v1315, %v1399
    %v1401 = vpop.f32.mrb[0].mxu0
    %v1402 = vpop.f32.mrb[0].mxu0
    %v1403 = vadd.f32 %v1315, %v1402
    %v1404 = vpop.f32.mrb[0].mxu0
    %1405 = vmatprep.mubr.bf16.mxu0 0
    %1406 = vmatmul.mubr.bf16.gmra.mrb[0].mxu0 %v1174
    %v1407 = vpop.f32.mrb[0].mxu0
    %v1408 = vadd.f32 %v1315, %v1407
    %v1409 = vpop.f32.mrb[0].mxu0
    %v1410 = vpop.f32.mrb[0].mxu0
    %v1411 = vpop.f32.mrb[0].mxu0
    %1412 = vdwg.mxu0
    %v1413 = vmul.f32 %v1281, 0.5
    %v1414 = vmul.f32 %v1284, 0.5
    %v1415 = vmul.f32 %v1289, 0.5
    %v1416 = vtanh.pop %v1413
    %v1417 = vtanh.pop %v1414
    %v1418 = vtanh.pop %v1415
    %v1419 = vadd.f32 %v1416, 1.0
    %v1420 = vadd.f32 %v1417, 1.0
    %v1421 = vadd.f32 %v1418, 1.0
    %v1422 = vmul.f32 %v1419, 0.5
    %v1423 = vmul.f32 %v1420, 0.5
    %v1424 = vmul.f32 %v1421, 0.5
    %v1425 = vmul.f32 %v1400, 0.5
    %v1426 = vmul.f32 %v1403, 0.5
    %v1427 = vmul.f32 %v1408, 0.5
    %v1428 = vtanh.pop %v1425
    %v1429 = vtanh.pop %v1426
    %v1430 = vtanh.pop %v1427
    %v1431 = vadd.f32 %v1428, 1.0
    %v1432 = vadd.f32 %v1429, 1.0
    %v1433 = vadd.f32 %v1430, 1.0
    %v1434 = vmul.f32 %v1431, 0.5
    %v1435 = vmul.f32 %v1432, 0.5
    %v1436 = vmul.f32 %v1433, 0.5
    %v1437 = vadd.f32 %v1422, %v1434
    %v1438 = vadd.f32 %v1423, %v1435
    %v1439 = vadd.f32 %v1424, %v1436
    %v1440 = vmul.f32 %v1437, 0.5
    %v1441 = vmul.f32 %v1438, 0.5
    %v1442 = vmul.f32 %v1439, 0.5
    %1443 = vst [vmem:[#allocation12] sm:$0xff] %v1440
    %1444 = vst [vmem:[#allocation12 + $0x8] sm:$0xff] %v1441
    %1445 = vst [vmem:[#allocation12 + $0x10] sm:$0xff] %v1442
    // Predicated region
    $region86: #{tpu_custom_call.1} parent=1 // pred_check
      _
    $region87: #{tpu_custom_call.1} parent=1 // pred_check_branch
      %1447 = sbr.rel (0) target = $region89
    $region88: #{tpu_custom_call.1} parent=1 // pred_region
      %s1449 = ssub.s32 384, 384
      %1450 = vsyncadd [#allocation5], %s1449
      %s1451 = sshll.u32 [#allocation12], 4
      %s1452 = int_to_ptr.vmem [resolvable:$true] %s1451
      %1457 = dma.vmem_to_hbm [thread:$0]  %s1452, 384, %s15, [#allocation5], 128, 128, 8
    $region89: #{tpu_custom_call.1} parent=1 // pred_fallthru
      _
    // Predicated region
    $region90: #{tpu_custom_call.1} parent=1 // pred_check
      _
    $region91: #{tpu_custom_call.1} parent=1 // pred_check_branch
      %1459 = sbr.rel (0) target = $region93
    $region92: #{tpu_custom_call.1} parent=1 // pred_region
      %1460 = dma.done [#allocation5], 384
    $region93: #{tpu_custom_call.1} parent=1 // pred_fallthru
      _
    %1461 = vsyncpa [#allocation4], 1
    %1462 = vsyncpa [#allocation7], 1
    %1463 = vsyncpa [#allocation10], 1
    %1464 = vsyncpa [#allocation5], 1

</llo_original>
